<compile_context>
chip_gen: v7x
topology: tpu7x:2x2x1
jax: 0.10.0
libtpu: 0.0.40
codegen_flags: <defaults>
</compile_context>

<pallas_src>
import functools

import jax
import jax.numpy as jnp
import numpy as np
from jax.experimental import pallas as pl


# ---------------------------------------------------------------------------
# Fused Pallas kernel: embedding output -> 2-layer LSTM -> Linear
# ---------------------------------------------------------------------------
def _fused_lstm_fc_kernel(x_ref, wih0_ref, whh0_ref, b0_ref,
                          wih1_ref, whh1_ref, b1_ref,
                          fcw_ref, fcb_ref, out_ref, *, B, T):
    """x_ref    : (T*B, E)  time-major embedded input
       wih*_ref : (IN, 4H)  input->gates weights (transposed, gate order i,f,o,g)
       whh*_ref : (H, 4H)   hidden->gates weights (transposed, gate order i,f,o,g)
       b*_ref   : (1, 4H)   b_ih + b_hh (permuted)
       fcw_ref  : (H, O), fcb_ref: (1, O)
       out_ref  : (B*T, O)  final output, batch-major rows (b*T + t)
    """
    H = whh0_ref.shape[0]

    x = x_ref[...]                       # (T*B, E)
    whh0 = whh0_ref[...]                 # (H, 4H)
    whh1 = whh1_ref[...]                 # (H, 4H)

    # ---- hoisted layer-0 input projection: one MXU call for all T steps ----
    gx0 = (jnp.dot(x, wih0_ref[...], preferred_element_type=jnp.float32)
           + b0_ref[...])                # (T*B, 4H)

    def gate_step(g_pre, h, c, whh):
        g = g_pre + jnp.dot(h, whh, preferred_element_type=jnp.float32)
        sig = jax.nn.sigmoid(g[:, :3 * H])   # contiguous (i, f, o) slab
        gg = jnp.tanh(g[:, 3 * H:])          # g gate
        i_g = sig[:, 0 * H:1 * H]
        f_g = sig[:, 1 * H:2 * H]
        o_g = sig[:, 2 * H:3 * H]
        c_new = f_g * c + i_g * gg
        h_new = o_g * jnp.tanh(c_new)
        return h_new, c_new

    # ---- layer 0 recurrence (time loop fully unrolled, static indices) ----
    h = jnp.zeros((B, H), jnp.float32)
    c = jnp.zeros((B, H), jnp.float32)
    h0_list = []
    for t in range(T):
        h, c = gate_step(gx0[t * B:(t + 1) * B, :], h, c, whh0)
        h0_list.append(h)
    h0_all = jnp.concatenate(h0_list, axis=0)            # (T*B, H) time-major

    # ---- hoisted layer-1 input projection ----
    gx1 = (jnp.dot(h0_all, wih1_ref[...], preferred_element_type=jnp.float32)
           + b1_ref[...])                # (T*B, 4H)

    # ---- layer 1 recurrence ----
    h = jnp.zeros((B, H), jnp.float32)
    c = jnp.zeros((B, H), jnp.float32)
    h1_list = []
    for t in range(T):
        h, c = gate_step(gx1[t * B:(t + 1) * B, :], h, c, whh1)
        h1_list.append(h)

    # ---- reorder time-major -> batch-major at trace time (static slices) ----
    # Output row b*T + t must hold (batch b, time t), matching PyTorch's
    # lstm_out.reshape(-1, output_size) with batch_first=True.
    rows = [h1_list[t][b:b + 1, :] for b in range(B) for t in range(T)]
    h1_bm = jnp.concatenate(rows, axis=0)                 # (B*T, H)

    # ---- final Linear for all rows in one MXU call, single store ----
    out_ref[...] = (jnp.dot(h1_bm, fcw_ref[...],
                            preferred_element_type=jnp.float32)
                    + fcb_ref[...])


def _full_spec(shape):
    zeros = (0,) * len(shape)
    return pl.BlockSpec(shape, lambda: zeros)


# ---------------------------------------------------------------------------
# Full model forward (Pallas-backed)
# ---------------------------------------------------------------------------
def lstm_generator_forward(params, sentence):
    """sentence: (B, T) int32 -> (B*T, output_size) float32 (PyTorch semantics)."""
    B, T = sentence.shape
    E = params["embedding"].shape[1]
    H = params["whh0_t"].shape[0]
    O = params["fc_w_t"].shape[1]

    # Embedding gather produced directly in time-major layout (no separate
    # activation transpose between ops).
    # TODO(synk): the row gather itself stays as one XLA op; a tiny-vocab
    # in-kernel gather is not worth a manual DMA path at this size.
    x_tm = jnp.take(params["embedding"], sentence.T, axis=0)     # (T, B, E)
    x_tm = x_tm.reshape(T * B, E).astype(jnp.float32)

    kern = functools.partial(_fused_lstm_fc_kernel, B=B, T=T)

    return pl.pallas_call(
        kern,
        out_shape=jax.ShapeDtypeStruct((B * T, O), jnp.float32),
        in_specs=[
            _full_spec((T * B, E)),
            _full_spec((E, 4 * H)), _full_spec((H, 4 * H)), _full_spec((1, 4 * H)),
            _full_spec((H, 4 * H)), _full_spec((H, 4 * H)), _full_spec((1, 4 * H)),
            _full_spec((H, O)), _full_spec((1, O)),
        ],
        out_specs=_full_spec((B * T, O)),
    )(x_tm,
      params["wih0_t"], params["whh0_t"], params["b0"],
      params["wih1_t"], params["whh1_t"], params["b1"],
      params["fc_w_t"], params["fc_b"])


# ---------------------------------------------------------------------------
# Raw (PyTorch-layout) parameters and kernel-layout preparation
# ---------------------------------------------------------------------------
def make_raw_params(key, embedding_dim, hidden_dim, vocab_size, output_size):
    E, H, V, O = embedding_dim, hidden_dim, vocab_size, output_size
    ks = jax.random.split(key, 12)
    scale = 1.0 / np.sqrt(H)

    def u(k, shape):
        return jax.random.uniform(k, shape, jnp.float32, -scale, scale)

    return {
        "hidden_dim": H,
        "embedding": jax.random.normal(ks[0], (V, E), jnp.float32),
        # nn.LSTM layer 0: W_ih (4H,E), W_hh (4H,H), biases (4H,), gates (i,f,g,o)
        "wih0": u(ks[1], (4 * H, E)), "whh0": u(ks[2], (4 * H, H)),
        "bih0": u(ks[3], (4 * H,)), "bhh0": u(ks[4], (4 * H,)),
        # nn.LSTM layer 1: W_ih (4H,H)
        "wih1": u(ks[5], (4 * H, H)), "whh1": u(ks[6], (4 * H, H)),
        "bih1": u(ks[7], (4 * H,)), "bhh1": u(ks[8], (4 * H,)),
        # nn.Linear(H, O)
        "fc_w": u(ks[9], (O, H)), "fc_b": u(ks[10], (O,)),
    }


def prepare_kernel_params(raw):
    """Offline (free) permutation + transpose into the kernel's layout."""
    H = raw["hidden_dim"]
    # PyTorch gate order (i, f, g, o) -> kernel order (i, f, o, g)
    perm = np.concatenate([np.arange(0, 2 * H),
                           np.arange(3 * H, 4 * H),
                           np.arange(2 * H, 3 * H)])

    def prep(wih, whh, bih, bhh):
        return (jnp.asarray(wih)[perm].T,
                jnp.asarray(whh)[perm].T,
                (bih + bhh)[perm].reshape(1, 4 * H))

    wih0_t, whh0_t, b0 = prep(raw["wih0"], raw["whh0"], raw["bih0"], raw["bhh0"])
    wih1_t, whh1_t, b1 = prep(raw["wih1"], raw["whh1"], raw["bih1"], raw["bhh1"])
    return {
        "embedding": raw["embedding"],
        "wih0_t": wih0_t, "whh0_t": whh0_t, "b0": b0,
        "wih1_t": wih1_t, "whh1_t": whh1_t, "b1": b1,
        "fc_w_t": raw["fc_w"].T, "fc_b": raw["fc_b"].reshape(1, -1),
    }


# ---------------------------------------------------------------------------
# Pure-JAX reference in PyTorch layout / gate order (correctness check)
# ---------------------------------------------------------------------------
def _ref_lstm_layer(x_tbf, wih, whh, bih, bhh, H):
    B = x_tbf.shape[1]

    def step(carry, x_t):
        h, c = carry
        gates = x_t @ wih.T + bih + h @ whh.T + bhh
        i_g = jax.nn.sigmoid(gates[:, 0 * H:1 * H])
        f_g = jax.nn.sigmoid(gates[:, 1 * H:2 * H])
        g_g = jnp.tanh(gates[:, 2 * H:3 * H])
        o_g = jax.nn.sigmoid(gates[:, 3 * H:4 * H])
        c = f_g * c + i_g * g_g
        h = o_g * jnp.tanh(c)
        return (h, c), h

    init = (jnp.zeros((B, H), jnp.float32), jnp.zeros((B, H), jnp.float32))
    _, hs = jax.lax.scan(step, init, x_tbf)
    return hs


def reference_forward(raw, sentence):
    B, T = sentence.shape
    H = raw["hidden_dim"]
    embeds = jnp.take(raw["embedding"], sentence, axis=0)         # (B, T, E)
    x = jnp.transpose(embeds, (1, 0, 2)).astype(jnp.float32)      # (T, B, E)
    x = _ref_lstm_layer(x, raw["wih0"], raw["whh0"], raw["bih0"], raw["bhh0"], H)
    x = _ref_lstm_layer(x, raw["wih1"], raw["whh1"], raw["bih1"], raw["bhh1"], H)
    lstm_out = jnp.transpose(x, (1, 0, 2)).reshape(B * T, H)
    return lstm_out @ raw["fc_w"].T + raw["fc_b"]


# ---------------------------------------------------------------------------
if __name__ == "__main__":
    embedding_dim = 16
    hidden_dim = 32
    vocab_size = 50
    output_size = 50
    B, T = 2, 8

    key = jax.random.PRNGKey(0)
    pkey, skey = jax.random.split(key)
    raw = make_raw_params(pkey, embedding_dim, hidden_dim, vocab_size, output_size)
    params = prepare_kernel_params(raw)
    sentence = jax.random.randint(skey, (B, T), 0, vocab_size, dtype=jnp.int32)

    fwd = jax.jit(lstm_generator_forward)
    out = jax.block_until_ready(fwd(params, sentence))
    assert out.shape == (B * T, output_size), out.shape

    ref = jax.block_until_ready(reference_forward(raw, sentence))
    np.testing.assert_allclose(np.asarray(out), np.asarray(ref),
                               rtol=1e-4, atol=1e-4)

    print("KERNEL_OK")
</pallas_src>

<mosaic_0001>
module attributes {stable_mosaic.version = 11 : i64} {
  func.func @_fused_lstm_fc_kernel(%arg0: memref<16x16xf32, #tpu.memory_space<vmem>>, %arg1: memref<16x128xf32, #tpu.memory_space<vmem>>, %arg2: memref<32x128xf32, #tpu.memory_space<vmem>>, %arg3: memref<1x128xf32, #tpu.memory_space<vmem>>, %arg4: memref<32x128xf32, #tpu.memory_space<vmem>>, %arg5: memref<32x128xf32, #tpu.memory_space<vmem>>, %arg6: memref<1x128xf32, #tpu.memory_space<vmem>>, %arg7: memref<32x50xf32, #tpu.memory_space<vmem>>, %arg8: memref<1x50xf32, #tpu.memory_space<vmem>>, %arg9: memref<16x50xf32, #tpu.memory_space<vmem>>) attributes {dimension_semantics = [], scalar_prefetch = 0 : i64, scratch_operands = 0 : i64, tpu.core_type = #tpu.core_type<tc>} {
    %c0 = arith.constant 0 : index
    %c0_0 = arith.constant 0 : index
    %0 = vector.load %arg0[%c0, %c0_0] : memref<16x16xf32, #tpu.memory_space<vmem>>, vector<16x16xf32>
    %c0_1 = arith.constant 0 : index
    %c0_2 = arith.constant 0 : index
    %1 = vector.load %arg2[%c0_1, %c0_2] : memref<32x128xf32, #tpu.memory_space<vmem>>, vector<32x128xf32>
    %c0_3 = arith.constant 0 : index
    %c0_4 = arith.constant 0 : index
    %2 = vector.load %arg5[%c0_3, %c0_4] : memref<32x128xf32, #tpu.memory_space<vmem>>, vector<32x128xf32>
    %c0_5 = arith.constant 0 : index
    %c0_6 = arith.constant 0 : index
    %3 = vector.load %arg1[%c0_5, %c0_6] : memref<16x128xf32, #tpu.memory_space<vmem>>, vector<16x128xf32>
    %cst = arith.constant dense<0.000000e+00> : vector<16x128xf32>
    %4 = tpu.matmul %0, %3, %cst {dimension_numbers = #tpu.dot_dimension_numbers<[1], [0], [0], [1], [0, 0, 1, 1], [], []>} : vector<16x16xf32>, vector<16x128xf32>, vector<16x128xf32> -> vector<16x128xf32>
    %c0_7 = arith.constant 0 : index
    %c0_8 = arith.constant 0 : index
    %5 = vector.load %arg3[%c0_7, %c0_8] : memref<1x128xf32, #tpu.memory_space<vmem>>, vector<1x128xf32>
    %6 = vector.broadcast %5 : vector<1x128xf32> to vector<16x128xf32>
    %7 = arith.addf %4, %6 : vector<16x128xf32>
    %cst_9 = arith.constant 0.000000e+00 : f32
    %8 = vector.broadcast %cst_9 : f32 to vector<2x32xf32>
    %cst_10 = arith.constant 0.000000e+00 : f32
    %9 = vector.broadcast %cst_10 : f32 to vector<2x32xf32>
    %10 = vector.extract_strided_slice %7 {offsets = [0, 0], sizes = [2, 128], strides = [1, 1]} : vector<16x128xf32> to vector<2x128xf32>
    %cst_11 = arith.constant dense<0.000000e+00> : vector<2x128xf32>
    %11 = tpu.matmul %8, %1, %cst_11 {dimension_numbers = #tpu.dot_dimension_numbers<[1], [0], [0], [1], [0, 0, 1, 1], [], []>} : vector<2x32xf32>, vector<32x128xf32>, vector<2x128xf32> -> vector<2x128xf32>
    %12 = arith.addf %10, %11 : vector<2x128xf32>
    %13 = vector.extract_strided_slice %12 {offsets = [0, 0], sizes = [2, 96], strides = [1, 1]} : vector<2x128xf32> to vector<2x96xf32>
    %14 = arith.negf %13 : vector<2x96xf32>
    %15 = math.exp %14 : vector<2x96xf32>
    %cst_12 = arith.constant 1.000000e+00 : f32
    %16 = vector.broadcast %cst_12 : f32 to vector<2x96xf32>
    %17 = arith.addf %16, %15 : vector<2x96xf32>
    %18 = arith.divf %16, %17 : vector<2x96xf32>
    %19 = vector.extract_strided_slice %12 {offsets = [0, 96], sizes = [2, 32], strides = [1, 1]} : vector<2x128xf32> to vector<2x32xf32>
    %20 = math.tanh %19 : vector<2x32xf32>
    %21 = vector.extract_strided_slice %18 {offsets = [0, 0], sizes = [2, 32], strides = [1, 1]} : vector<2x96xf32> to vector<2x32xf32>
    %22 = vector.extract_strided_slice %18 {offsets = [0, 32], sizes = [2, 32], strides = [1, 1]} : vector<2x96xf32> to vector<2x32xf32>
    %23 = vector.extract_strided_slice %18 {offsets = [0, 64], sizes = [2, 32], strides = [1, 1]} : vector<2x96xf32> to vector<2x32xf32>
    %24 = arith.mulf %22, %9 : vector<2x32xf32>
    %25 = arith.mulf %21, %20 : vector<2x32xf32>
    %26 = arith.addf %24, %25 : vector<2x32xf32>
    %27 = math.tanh %26 : vector<2x32xf32>
    %28 = arith.mulf %23, %27 : vector<2x32xf32>
    %29 = vector.extract_strided_slice %7 {offsets = [2, 0], sizes = [2, 128], strides = [1, 1]} : vector<16x128xf32> to vector<2x128xf32>
    %cst_13 = arith.constant dense<0.000000e+00> : vector<2x128xf32>
    %30 = tpu.matmul %28, %1, %cst_13 {dimension_numbers = #tpu.dot_dimension_numbers<[1], [0], [0], [1], [0, 0, 1, 1], [], []>} : vector<2x32xf32>, vector<32x128xf32>, vector<2x128xf32> -> vector<2x128xf32>
    %31 = arith.addf %29, %30 : vector<2x128xf32>
    %32 = vector.extract_strided_slice %31 {offsets = [0, 0], sizes = [2, 96], strides = [1, 1]} : vector<2x128xf32> to vector<2x96xf32>
    %33 = arith.negf %32 : vector<2x96xf32>
    %34 = math.exp %33 : vector<2x96xf32>
    %cst_14 = arith.constant 1.000000e+00 : f32
    %35 = vector.broadcast %cst_14 : f32 to vector<2x96xf32>
    %36 = arith.addf %35, %34 : vector<2x96xf32>
    %37 = arith.divf %35, %36 : vector<2x96xf32>
    %38 = vector.extract_strided_slice %31 {offsets = [0, 96], sizes = [2, 32], strides = [1, 1]} : vector<2x128xf32> to vector<2x32xf32>
    %39 = math.tanh %38 : vector<2x32xf32>
    %40 = vector.extract_strided_slice %37 {offsets = [0, 0], sizes = [2, 32], strides = [1, 1]} : vector<2x96xf32> to vector<2x32xf32>
    %41 = vector.extract_strided_slice %37 {offsets = [0, 32], sizes = [2, 32], strides = [1, 1]} : vector<2x96xf32> to vector<2x32xf32>
    %42 = vector.extract_strided_slice %37 {offsets = [0, 64], sizes = [2, 32], strides = [1, 1]} : vector<2x96xf32> to vector<2x32xf32>
    %43 = arith.mulf %41, %26 : vector<2x32xf32>
    %44 = arith.mulf %40, %39 : vector<2x32xf32>
    %45 = arith.addf %43, %44 : vector<2x32xf32>
    %46 = math.tanh %45 : vector<2x32xf32>
    %47 = arith.mulf %42, %46 : vector<2x32xf32>
    %48 = vector.extract_strided_slice %7 {offsets = [4, 0], sizes = [2, 128], strides = [1, 1]} : vector<16x128xf32> to vector<2x128xf32>
    %cst_15 = arith.constant dense<0.000000e+00> : vector<2x128xf32>
    %49 = tpu.matmul %47, %1, %cst_15 {dimension_numbers = #tpu.dot_dimension_numbers<[1], [0], [0], [1], [0, 0, 1, 1], [], []>} : vector<2x32xf32>, vector<32x128xf32>, vector<2x128xf32> -> vector<2x128xf32>
    %50 = arith.addf %48, %49 : vector<2x128xf32>
    %51 = vector.extract_strided_slice %50 {offsets = [0, 0], sizes = [2, 96], strides = [1, 1]} : vector<2x128xf32> to vector<2x96xf32>
    %52 = arith.negf %51 : vector<2x96xf32>
    %53 = math.exp %52 : vector<2x96xf32>
    %cst_16 = arith.constant 1.000000e+00 : f32
    %54 = vector.broadcast %cst_16 : f32 to vector<2x96xf32>
    %55 = arith.addf %54, %53 : vector<2x96xf32>
    %56 = arith.divf %54, %55 : vector<2x96xf32>
    %57 = vector.extract_strided_slice %50 {offsets = [0, 96], sizes = [2, 32], strides = [1, 1]} : vector<2x128xf32> to vector<2x32xf32>
    %58 = math.tanh %57 : vector<2x32xf32>
    %59 = vector.extract_strided_slice %56 {offsets = [0, 0], sizes = [2, 32], strides = [1, 1]} : vector<2x96xf32> to vector<2x32xf32>
    %60 = vector.extract_strided_slice %56 {offsets = [0, 32], sizes = [2, 32], strides = [1, 1]} : vector<2x96xf32> to vector<2x32xf32>
    %61 = vector.extract_strided_slice %56 {offsets = [0, 64], sizes = [2, 32], strides = [1, 1]} : vector<2x96xf32> to vector<2x32xf32>
    %62 = arith.mulf %60, %45 : vector<2x32xf32>
    %63 = arith.mulf %59, %58 : vector<2x32xf32>
    %64 = arith.addf %62, %63 : vector<2x32xf32>
    %65 = math.tanh %64 : vector<2x32xf32>
    %66 = arith.mulf %61, %65 : vector<2x32xf32>
    %67 = vector.extract_strided_slice %7 {offsets = [6, 0], sizes = [2, 128], strides = [1, 1]} : vector<16x128xf32> to vector<2x128xf32>
    %cst_17 = arith.constant dense<0.000000e+00> : vector<2x128xf32>
    %68 = tpu.matmul %66, %1, %cst_17 {dimension_numbers = #tpu.dot_dimension_numbers<[1], [0], [0], [1], [0, 0, 1, 1], [], []>} : vector<2x32xf32>, vector<32x128xf32>, vector<2x128xf32> -> vector<2x128xf32>
    %69 = arith.addf %67, %68 : vector<2x128xf32>
    %70 = vector.extract_strided_slice %69 {offsets = [0, 0], sizes = [2, 96], strides = [1, 1]} : vector<2x128xf32> to vector<2x96xf32>
    %71 = arith.negf %70 : vector<2x96xf32>
    %72 = math.exp %71 : vector<2x96xf32>
    %cst_18 = arith.constant 1.000000e+00 : f32
    %73 = vector.broadcast %cst_18 : f32 to vector<2x96xf32>
    %74 = arith.addf %73, %72 : vector<2x96xf32>
    %75 = arith.divf %73, %74 : vector<2x96xf32>
    %76 = vector.extract_strided_slice %69 {offsets = [0, 96], sizes = [2, 32], strides = [1, 1]} : vector<2x128xf32> to vector<2x32xf32>
    %77 = math.tanh %76 : vector<2x32xf32>
    %78 = vector.extract_strided_slice %75 {offsets = [0, 0], sizes = [2, 32], strides = [1, 1]} : vector<2x96xf32> to vector<2x32xf32>
    %79 = vector.extract_strided_slice %75 {offsets = [0, 32], sizes = [2, 32], strides = [1, 1]} : vector<2x96xf32> to vector<2x32xf32>
    %80 = vector.extract_strided_slice %75 {offsets = [0, 64], sizes = [2, 32], strides = [1, 1]} : vector<2x96xf32> to vector<2x32xf32>
    %81 = arith.mulf %79, %64 : vector<2x32xf32>
    %82 = arith.mulf %78, %77 : vector<2x32xf32>
    %83 = arith.addf %81, %82 : vector<2x32xf32>
    %84 = math.tanh %83 : vector<2x32xf32>
    %85 = arith.mulf %80, %84 : vector<2x32xf32>
    %86 = vector.extract_strided_slice %7 {offsets = [8, 0], sizes = [2, 128], strides = [1, 1]} : vector<16x128xf32> to vector<2x128xf32>
    %cst_19 = arith.constant dense<0.000000e+00> : vector<2x128xf32>
    %87 = tpu.matmul %85, %1, %cst_19 {dimension_numbers = #tpu.dot_dimension_numbers<[1], [0], [0], [1], [0, 0, 1, 1], [], []>} : vector<2x32xf32>, vector<32x128xf32>, vector<2x128xf32> -> vector<2x128xf32>
    %88 = arith.addf %86, %87 : vector<2x128xf32>
    %89 = vector.extract_strided_slice %88 {offsets = [0, 0], sizes = [2, 96], strides = [1, 1]} : vector<2x128xf32> to vector<2x96xf32>
    %90 = arith.negf %89 : vector<2x96xf32>
    %91 = math.exp %90 : vector<2x96xf32>
    %cst_20 = arith.constant 1.000000e+00 : f32
    %92 = vector.broadcast %cst_20 : f32 to vector<2x96xf32>
    %93 = arith.addf %92, %91 : vector<2x96xf32>
    %94 = arith.divf %92, %93 : vector<2x96xf32>
    %95 = vector.extract_strided_slice %88 {offsets = [0, 96], sizes = [2, 32], strides = [1, 1]} : vector<2x128xf32> to vector<2x32xf32>
    %96 = math.tanh %95 : vector<2x32xf32>
    %97 = vector.extract_strided_slice %94 {offsets = [0, 0], sizes = [2, 32], strides = [1, 1]} : vector<2x96xf32> to vector<2x32xf32>
    %98 = vector.extract_strided_slice %94 {offsets = [0, 32], sizes = [2, 32], strides = [1, 1]} : vector<2x96xf32> to vector<2x32xf32>
    %99 = vector.extract_strided_slice %94 {offsets = [0, 64], sizes = [2, 32], strides = [1, 1]} : vector<2x96xf32> to vector<2x32xf32>
    %100 = arith.mulf %98, %83 : vector<2x32xf32>
    %101 = arith.mulf %97, %96 : vector<2x32xf32>
    %102 = arith.addf %100, %101 : vector<2x32xf32>
    %103 = math.tanh %102 : vector<2x32xf32>
    %104 = arith.mulf %99, %103 : vector<2x32xf32>
    %105 = vector.extract_strided_slice %7 {offsets = [10, 0], sizes = [2, 128], strides = [1, 1]} : vector<16x128xf32> to vector<2x128xf32>
    %cst_21 = arith.constant dense<0.000000e+00> : vector<2x128xf32>
    %106 = tpu.matmul %104, %1, %cst_21 {dimension_numbers = #tpu.dot_dimension_numbers<[1], [0], [0], [1], [0, 0, 1, 1], [], []>} : vector<2x32xf32>, vector<32x128xf32>, vector<2x128xf32> -> vector<2x128xf32>
    %107 = arith.addf %105, %106 : vector<2x128xf32>
    %108 = vector.extract_strided_slice %107 {offsets = [0, 0], sizes = [2, 96], strides = [1, 1]} : vector<2x128xf32> to vector<2x96xf32>
    %109 = arith.negf %108 : vector<2x96xf32>
    %110 = math.exp %109 : vector<2x96xf32>
    %cst_22 = arith.constant 1.000000e+00 : f32
    %111 = vector.broadcast %cst_22 : f32 to vector<2x96xf32>
    %112 = arith.addf %111, %110 : vector<2x96xf32>
    %113 = arith.divf %111, %112 : vector<2x96xf32>
    %114 = vector.extract_strided_slice %107 {offsets = [0, 96], sizes = [2, 32], strides = [1, 1]} : vector<2x128xf32> to vector<2x32xf32>
    %115 = math.tanh %114 : vector<2x32xf32>
    %116 = vector.extract_strided_slice %113 {offsets = [0, 0], sizes = [2, 32], strides = [1, 1]} : vector<2x96xf32> to vector<2x32xf32>
    %117 = vector.extract_strided_slice %113 {offsets = [0, 32], sizes = [2, 32], strides = [1, 1]} : vector<2x96xf32> to vector<2x32xf32>
    %118 = vector.extract_strided_slice %113 {offsets = [0, 64], sizes = [2, 32], strides = [1, 1]} : vector<2x96xf32> to vector<2x32xf32>
    %119 = arith.mulf %117, %102 : vector<2x32xf32>
    %120 = arith.mulf %116, %115 : vector<2x32xf32>
    %121 = arith.addf %119, %120 : vector<2x32xf32>
    %122 = math.tanh %121 : vector<2x32xf32>
    %123 = arith.mulf %118, %122 : vector<2x32xf32>
    %124 = vector.extract_strided_slice %7 {offsets = [12, 0], sizes = [2, 128], strides = [1, 1]} : vector<16x128xf32> to vector<2x128xf32>
    %cst_23 = arith.constant dense<0.000000e+00> : vector<2x128xf32>
    %125 = tpu.matmul %123, %1, %cst_23 {dimension_numbers = #tpu.dot_dimension_numbers<[1], [0], [0], [1], [0, 0, 1, 1], [], []>} : vector<2x32xf32>, vector<32x128xf32>, vector<2x128xf32> -> vector<2x128xf32>
    %126 = arith.addf %124, %125 : vector<2x128xf32>
    %127 = vector.extract_strided_slice %126 {offsets = [0, 0], sizes = [2, 96], strides = [1, 1]} : vector<2x128xf32> to vector<2x96xf32>
    %128 = arith.negf %127 : vector<2x96xf32>
    %129 = math.exp %128 : vector<2x96xf32>
    %cst_24 = arith.constant 1.000000e+00 : f32
    %130 = vector.broadcast %cst_24 : f32 to vector<2x96xf32>
    %131 = arith.addf %130, %129 : vector<2x96xf32>
    %132 = arith.divf %130, %131 : vector<2x96xf32>
    %133 = vector.extract_strided_slice %126 {offsets = [0, 96], sizes = [2, 32], strides = [1, 1]} : vector<2x128xf32> to vector<2x32xf32>
    %134 = math.tanh %133 : vector<2x32xf32>
    %135 = vector.extract_strided_slice %132 {offsets = [0, 0], sizes = [2, 32], strides = [1, 1]} : vector<2x96xf32> to vector<2x32xf32>
    %136 = vector.extract_strided_slice %132 {offsets = [0, 32], sizes = [2, 32], strides = [1, 1]} : vector<2x96xf32> to vector<2x32xf32>
    %137 = vector.extract_strided_slice %132 {offsets = [0, 64], sizes = [2, 32], strides = [1, 1]} : vector<2x96xf32> to vector<2x32xf32>
    %138 = arith.mulf %136, %121 : vector<2x32xf32>
    %139 = arith.mulf %135, %134 : vector<2x32xf32>
    %140 = arith.addf %138, %139 : vector<2x32xf32>
    %141 = math.tanh %140 : vector<2x32xf32>
    %142 = arith.mulf %137, %141 : vector<2x32xf32>
    %143 = vector.extract_strided_slice %7 {offsets = [14, 0], sizes = [2, 128], strides = [1, 1]} : vector<16x128xf32> to vector<2x128xf32>
    %cst_25 = arith.constant dense<0.000000e+00> : vector<2x128xf32>
    %144 = tpu.matmul %142, %1, %cst_25 {dimension_numbers = #tpu.dot_dimension_numbers<[1], [0], [0], [1], [0, 0, 1, 1], [], []>} : vector<2x32xf32>, vector<32x128xf32>, vector<2x128xf32> -> vector<2x128xf32>
    %145 = arith.addf %143, %144 : vector<2x128xf32>
    %146 = vector.extract_strided_slice %145 {offsets = [0, 0], sizes = [2, 96], strides = [1, 1]} : vector<2x128xf32> to vector<2x96xf32>
    %147 = arith.negf %146 : vector<2x96xf32>
    %148 = math.exp %147 : vector<2x96xf32>
    %cst_26 = arith.constant 1.000000e+00 : f32
    %149 = vector.broadcast %cst_26 : f32 to vector<2x96xf32>
    %150 = arith.addf %149, %148 : vector<2x96xf32>
    %151 = arith.divf %149, %150 : vector<2x96xf32>
    %152 = vector.extract_strided_slice %145 {offsets = [0, 96], sizes = [2, 32], strides = [1, 1]} : vector<2x128xf32> to vector<2x32xf32>
    %153 = math.tanh %152 : vector<2x32xf32>
    %154 = vector.extract_strided_slice %151 {offsets = [0, 0], sizes = [2, 32], strides = [1, 1]} : vector<2x96xf32> to vector<2x32xf32>
    %155 = vector.extract_strided_slice %151 {offsets = [0, 32], sizes = [2, 32], strides = [1, 1]} : vector<2x96xf32> to vector<2x32xf32>
    %156 = vector.extract_strided_slice %151 {offsets = [0, 64], sizes = [2, 32], strides = [1, 1]} : vector<2x96xf32> to vector<2x32xf32>
    %157 = arith.mulf %155, %140 : vector<2x32xf32>
    %158 = arith.mulf %154, %153 : vector<2x32xf32>
    %159 = arith.addf %157, %158 : vector<2x32xf32>
    %160 = math.tanh %159 : vector<2x32xf32>
    %161 = arith.mulf %156, %160 : vector<2x32xf32>
    %162 = tpu.concatenate %28, %47, %66, %85, %104, %123, %142, %161 in 0 : vector<2x32xf32>, vector<2x32xf32>, vector<2x32xf32>, vector<2x32xf32>, vector<2x32xf32>, vector<2x32xf32>, vector<2x32xf32>, vector<2x32xf32> -> vector<16x32xf32>
    %c0_27 = arith.constant 0 : index
    %c0_28 = arith.constant 0 : index
    %163 = vector.load %arg4[%c0_27, %c0_28] : memref<32x128xf32, #tpu.memory_space<vmem>>, vector<32x128xf32>
    %cst_29 = arith.constant dense<0.000000e+00> : vector<16x128xf32>
    %164 = tpu.matmul %162, %163, %cst_29 {dimension_numbers = #tpu.dot_dimension_numbers<[1], [0], [0], [1], [0, 0, 1, 1], [], []>} : vector<16x32xf32>, vector<32x128xf32>, vector<16x128xf32> -> vector<16x128xf32>
    %c0_30 = arith.constant 0 : index
    %c0_31 = arith.constant 0 : index
    %165 = vector.load %arg6[%c0_30, %c0_31] : memref<1x128xf32, #tpu.memory_space<vmem>>, vector<1x128xf32>
    %166 = vector.broadcast %165 : vector<1x128xf32> to vector<16x128xf32>
    %167 = arith.addf %164, %166 : vector<16x128xf32>
    %cst_32 = arith.constant 0.000000e+00 : f32
    %168 = vector.broadcast %cst_32 : f32 to vector<2x32xf32>
    %cst_33 = arith.constant 0.000000e+00 : f32
    %169 = vector.broadcast %cst_33 : f32 to vector<2x32xf32>
    %170 = vector.extract_strided_slice %167 {offsets = [0, 0], sizes = [2, 128], strides = [1, 1]} : vector<16x128xf32> to vector<2x128xf32>
    %cst_34 = arith.constant dense<0.000000e+00> : vector<2x128xf32>
    %171 = tpu.matmul %168, %2, %cst_34 {dimension_numbers = #tpu.dot_dimension_numbers<[1], [0], [0], [1], [0, 0, 1, 1], [], []>} : vector<2x32xf32>, vector<32x128xf32>, vector<2x128xf32> -> vector<2x128xf32>
    %172 = arith.addf %170, %171 : vector<2x128xf32>
    %173 = vector.extract_strided_slice %172 {offsets = [0, 0], sizes = [2, 96], strides = [1, 1]} : vector<2x128xf32> to vector<2x96xf32>
    %174 = arith.negf %173 : vector<2x96xf32>
    %175 = math.exp %174 : vector<2x96xf32>
    %cst_35 = arith.constant 1.000000e+00 : f32
    %176 = vector.broadcast %cst_35 : f32 to vector<2x96xf32>
    %177 = arith.addf %176, %175 : vector<2x96xf32>
    %178 = arith.divf %176, %177 : vector<2x96xf32>
    %179 = vector.extract_strided_slice %172 {offsets = [0, 96], sizes = [2, 32], strides = [1, 1]} : vector<2x128xf32> to vector<2x32xf32>
    %180 = math.tanh %179 : vector<2x32xf32>
    %181 = vector.extract_strided_slice %178 {offsets = [0, 0], sizes = [2, 32], strides = [1, 1]} : vector<2x96xf32> to vector<2x32xf32>
    %182 = vector.extract_strided_slice %178 {offsets = [0, 32], sizes = [2, 32], strides = [1, 1]} : vector<2x96xf32> to vector<2x32xf32>
    %183 = vector.extract_strided_slice %178 {offsets = [0, 64], sizes = [2, 32], strides = [1, 1]} : vector<2x96xf32> to vector<2x32xf32>
    %184 = arith.mulf %182, %169 : vector<2x32xf32>
    %185 = arith.mulf %181, %180 : vector<2x32xf32>
    %186 = arith.addf %184, %185 : vector<2x32xf32>
    %187 = math.tanh %186 : vector<2x32xf32>
    %188 = arith.mulf %183, %187 : vector<2x32xf32>
    %189 = vector.extract_strided_slice %167 {offsets = [2, 0], sizes = [2, 128], strides = [1, 1]} : vector<16x128xf32> to vector<2x128xf32>
    %cst_36 = arith.constant dense<0.000000e+00> : vector<2x128xf32>
    %190 = tpu.matmul %188, %2, %cst_36 {dimension_numbers = #tpu.dot_dimension_numbers<[1], [0], [0], [1], [0, 0, 1, 1], [], []>} : vector<2x32xf32>, vector<32x128xf32>, vector<2x128xf32> -> vector<2x128xf32>
    %191 = arith.addf %189, %190 : vector<2x128xf32>
    %192 = vector.extract_strided_slice %191 {offsets = [0, 0], sizes = [2, 96], strides = [1, 1]} : vector<2x128xf32> to vector<2x96xf32>
    %193 = arith.negf %192 : vector<2x96xf32>
    %194 = math.exp %193 : vector<2x96xf32>
    %cst_37 = arith.constant 1.000000e+00 : f32
    %195 = vector.broadcast %cst_37 : f32 to vector<2x96xf32>
    %196 = arith.addf %195, %194 : vector<2x96xf32>
    %197 = arith.divf %195, %196 : vector<2x96xf32>
    %198 = vector.extract_strided_slice %191 {offsets = [0, 96], sizes = [2, 32], strides = [1, 1]} : vector<2x128xf32> to vector<2x32xf32>
    %199 = math.tanh %198 : vector<2x32xf32>
    %200 = vector.extract_strided_slice %197 {offsets = [0, 0], sizes = [2, 32], strides = [1, 1]} : vector<2x96xf32> to vector<2x32xf32>
    %201 = vector.extract_strided_slice %197 {offsets = [0, 32], sizes = [2, 32], strides = [1, 1]} : vector<2x96xf32> to vector<2x32xf32>
    %202 = vector.extract_strided_slice %197 {offsets = [0, 64], sizes = [2, 32], strides = [1, 1]} : vector<2x96xf32> to vector<2x32xf32>
    %203 = arith.mulf %201, %186 : vector<2x32xf32>
    %204 = arith.mulf %200, %199 : vector<2x32xf32>
    %205 = arith.addf %203, %204 : vector<2x32xf32>
    %206 = math.tanh %205 : vector<2x32xf32>
    %207 = arith.mulf %202, %206 : vector<2x32xf32>
    %208 = vector.extract_strided_slice %167 {offsets = [4, 0], sizes = [2, 128], strides = [1, 1]} : vector<16x128xf32> to vector<2x128xf32>
    %cst_38 = arith.constant dense<0.000000e+00> : vector<2x128xf32>
    %209 = tpu.matmul %207, %2, %cst_38 {dimension_numbers = #tpu.dot_dimension_numbers<[1], [0], [0], [1], [0, 0, 1, 1], [], []>} : vector<2x32xf32>, vector<32x128xf32>, vector<2x128xf32> -> vector<2x128xf32>
    %210 = arith.addf %208, %209 : vector<2x128xf32>
    %211 = vector.extract_strided_slice %210 {offsets = [0, 0], sizes = [2, 96], strides = [1, 1]} : vector<2x128xf32> to vector<2x96xf32>
    %212 = arith.negf %211 : vector<2x96xf32>
    %213 = math.exp %212 : vector<2x96xf32>
    %cst_39 = arith.constant 1.000000e+00 : f32
    %214 = vector.broadcast %cst_39 : f32 to vector<2x96xf32>
    %215 = arith.addf %214, %213 : vector<2x96xf32>
    %216 = arith.divf %214, %215 : vector<2x96xf32>
    %217 = vector.extract_strided_slice %210 {offsets = [0, 96], sizes = [2, 32], strides = [1, 1]} : vector<2x128xf32> to vector<2x32xf32>
    %218 = math.tanh %217 : vector<2x32xf32>
    %219 = vector.extract_strided_slice %216 {offsets = [0, 0], sizes = [2, 32], strides = [1, 1]} : vector<2x96xf32> to vector<2x32xf32>
    %220 = vector.extract_strided_slice %216 {offsets = [0, 32], sizes = [2, 32], strides = [1, 1]} : vector<2x96xf32> to vector<2x32xf32>
    %221 = vector.extract_strided_slice %216 {offsets = [0, 64], sizes = [2, 32], strides = [1, 1]} : vector<2x96xf32> to vector<2x32xf32>
    %222 = arith.mulf %220, %205 : vector<2x32xf32>
    %223 = arith.mulf %219, %218 : vector<2x32xf32>
    %224 = arith.addf %222, %223 : vector<2x32xf32>
    %225 = math.tanh %224 : vector<2x32xf32>
    %226 = arith.mulf %221, %225 : vector<2x32xf32>
    %227 = vector.extract_strided_slice %167 {offsets = [6, 0], sizes = [2, 128], strides = [1, 1]} : vector<16x128xf32> to vector<2x128xf32>
    %cst_40 = arith.constant dense<0.000000e+00> : vector<2x128xf32>
    %228 = tpu.matmul %226, %2, %cst_40 {dimension_numbers = #tpu.dot_dimension_numbers<[1], [0], [0], [1], [0, 0, 1, 1], [], []>} : vector<2x32xf32>, vector<32x128xf32>, vector<2x128xf32> -> vector<2x128xf32>
    %229 = arith.addf %227, %228 : vector<2x128xf32>
    %230 = vector.extract_strided_slice %229 {offsets = [0, 0], sizes = [2, 96], strides = [1, 1]} : vector<2x128xf32> to vector<2x96xf32>
    %231 = arith.negf %230 : vector<2x96xf32>
    %232 = math.exp %231 : vector<2x96xf32>
    %cst_41 = arith.constant 1.000000e+00 : f32
    %233 = vector.broadcast %cst_41 : f32 to vector<2x96xf32>
    %234 = arith.addf %233, %232 : vector<2x96xf32>
    %235 = arith.divf %233, %234 : vector<2x96xf32>
    %236 = vector.extract_strided_slice %229 {offsets = [0, 96], sizes = [2, 32], strides = [1, 1]} : vector<2x128xf32> to vector<2x32xf32>
    %237 = math.tanh %236 : vector<2x32xf32>
    %238 = vector.extract_strided_slice %235 {offsets = [0, 0], sizes = [2, 32], strides = [1, 1]} : vector<2x96xf32> to vector<2x32xf32>
    %239 = vector.extract_strided_slice %235 {offsets = [0, 32], sizes = [2, 32], strides = [1, 1]} : vector<2x96xf32> to vector<2x32xf32>
    %240 = vector.extract_strided_slice %235 {offsets = [0, 64], sizes = [2, 32], strides = [1, 1]} : vector<2x96xf32> to vector<2x32xf32>
    %241 = arith.mulf %239, %224 : vector<2x32xf32>
    %242 = arith.mulf %238, %237 : vector<2x32xf32>
    %243 = arith.addf %241, %242 : vector<2x32xf32>
    %244 = math.tanh %243 : vector<2x32xf32>
    %245 = arith.mulf %240, %244 : vector<2x32xf32>
    %246 = vector.extract_strided_slice %167 {offsets = [8, 0], sizes = [2, 128], strides = [1, 1]} : vector<16x128xf32> to vector<2x128xf32>
    %cst_42 = arith.constant dense<0.000000e+00> : vector<2x128xf32>
    %247 = tpu.matmul %245, %2, %cst_42 {dimension_numbers = #tpu.dot_dimension_numbers<[1], [0], [0], [1], [0, 0, 1, 1], [], []>} : vector<2x32xf32>, vector<32x128xf32>, vector<2x128xf32> -> vector<2x128xf32>
    %248 = arith.addf %246, %247 : vector<2x128xf32>
    %249 = vector.extract_strided_slice %248 {offsets = [0, 0], sizes = [2, 96], strides = [1, 1]} : vector<2x128xf32> to vector<2x96xf32>
    %250 = arith.negf %249 : vector<2x96xf32>
    %251 = math.exp %250 : vector<2x96xf32>
    %cst_43 = arith.constant 1.000000e+00 : f32
    %252 = vector.broadcast %cst_43 : f32 to vector<2x96xf32>
    %253 = arith.addf %252, %251 : vector<2x96xf32>
    %254 = arith.divf %252, %253 : vector<2x96xf32>
    %255 = vector.extract_strided_slice %248 {offsets = [0, 96], sizes = [2, 32], strides = [1, 1]} : vector<2x128xf32> to vector<2x32xf32>
    %256 = math.tanh %255 : vector<2x32xf32>
    %257 = vector.extract_strided_slice %254 {offsets = [0, 0], sizes = [2, 32], strides = [1, 1]} : vector<2x96xf32> to vector<2x32xf32>
    %258 = vector.extract_strided_slice %254 {offsets = [0, 32], sizes = [2, 32], strides = [1, 1]} : vector<2x96xf32> to vector<2x32xf32>
    %259 = vector.extract_strided_slice %254 {offsets = [0, 64], sizes = [2, 32], strides = [1, 1]} : vector<2x96xf32> to vector<2x32xf32>
    %260 = arith.mulf %258, %243 : vector<2x32xf32>
    %261 = arith.mulf %257, %256 : vector<2x32xf32>
    %262 = arith.addf %260, %261 : vector<2x32xf32>
    %263 = math.tanh %262 : vector<2x32xf32>
    %264 = arith.mulf %259, %263 : vector<2x32xf32>
    %265 = vector.extract_strided_slice %167 {offsets = [10, 0], sizes = [2, 128], strides = [1, 1]} : vector<16x128xf32> to vector<2x128xf32>
    %cst_44 = arith.constant dense<0.000000e+00> : vector<2x128xf32>
    %266 = tpu.matmul %264, %2, %cst_44 {dimension_numbers = #tpu.dot_dimension_numbers<[1], [0], [0], [1], [0, 0, 1, 1], [], []>} : vector<2x32xf32>, vector<32x128xf32>, vector<2x128xf32> -> vector<2x128xf32>
    %267 = arith.addf %265, %266 : vector<2x128xf32>
    %268 = vector.extract_strided_slice %267 {offsets = [0, 0], sizes = [2, 96], strides = [1, 1]} : vector<2x128xf32> to vector<2x96xf32>
    %269 = arith.negf %268 : vector<2x96xf32>
    %270 = math.exp %269 : vector<2x96xf32>
    %cst_45 = arith.constant 1.000000e+00 : f32
    %271 = vector.broadcast %cst_45 : f32 to vector<2x96xf32>
    %272 = arith.addf %271, %270 : vector<2x96xf32>
    %273 = arith.divf %271, %272 : vector<2x96xf32>
    %274 = vector.extract_strided_slice %267 {offsets = [0, 96], sizes = [2, 32], strides = [1, 1]} : vector<2x128xf32> to vector<2x32xf32>
    %275 = math.tanh %274 : vector<2x32xf32>
    %276 = vector.extract_strided_slice %273 {offsets = [0, 0], sizes = [2, 32], strides = [1, 1]} : vector<2x96xf32> to vector<2x32xf32>
    %277 = vector.extract_strided_slice %273 {offsets = [0, 32], sizes = [2, 32], strides = [1, 1]} : vector<2x96xf32> to vector<2x32xf32>
    %278 = vector.extract_strided_slice %273 {offsets = [0, 64], sizes = [2, 32], strides = [1, 1]} : vector<2x96xf32> to vector<2x32xf32>
    %279 = arith.mulf %277, %262 : vector<2x32xf32>
    %280 = arith.mulf %276, %275 : vector<2x32xf32>
    %281 = arith.addf %279, %280 : vector<2x32xf32>
    %282 = math.tanh %281 : vector<2x32xf32>
    %283 = arith.mulf %278, %282 : vector<2x32xf32>
    %284 = vector.extract_strided_slice %167 {offsets = [12, 0], sizes = [2, 128], strides = [1, 1]} : vector<16x128xf32> to vector<2x128xf32>
    %cst_46 = arith.constant dense<0.000000e+00> : vector<2x128xf32>
    %285 = tpu.matmul %283, %2, %cst_46 {dimension_numbers = #tpu.dot_dimension_numbers<[1], [0], [0], [1], [0, 0, 1, 1], [], []>} : vector<2x32xf32>, vector<32x128xf32>, vector<2x128xf32> -> vector<2x128xf32>
    %286 = arith.addf %284, %285 : vector<2x128xf32>
    %287 = vector.extract_strided_slice %286 {offsets = [0, 0], sizes = [2, 96], strides = [1, 1]} : vector<2x128xf32> to vector<2x96xf32>
    %288 = arith.negf %287 : vector<2x96xf32>
    %289 = math.exp %288 : vector<2x96xf32>
    %cst_47 = arith.constant 1.000000e+00 : f32
    %290 = vector.broadcast %cst_47 : f32 to vector<2x96xf32>
    %291 = arith.addf %290, %289 : vector<2x96xf32>
    %292 = arith.divf %290, %291 : vector<2x96xf32>
    %293 = vector.extract_strided_slice %286 {offsets = [0, 96], sizes = [2, 32], strides = [1, 1]} : vector<2x128xf32> to vector<2x32xf32>
    %294 = math.tanh %293 : vector<2x32xf32>
    %295 = vector.extract_strided_slice %292 {offsets = [0, 0], sizes = [2, 32], strides = [1, 1]} : vector<2x96xf32> to vector<2x32xf32>
    %296 = vector.extract_strided_slice %292 {offsets = [0, 32], sizes = [2, 32], strides = [1, 1]} : vector<2x96xf32> to vector<2x32xf32>
    %297 = vector.extract_strided_slice %292 {offsets = [0, 64], sizes = [2, 32], strides = [1, 1]} : vector<2x96xf32> to vector<2x32xf32>
    %298 = arith.mulf %296, %281 : vector<2x32xf32>
    %299 = arith.mulf %295, %294 : vector<2x32xf32>
    %300 = arith.addf %298, %299 : vector<2x32xf32>
    %301 = math.tanh %300 : vector<2x32xf32>
    %302 = arith.mulf %297, %301 : vector<2x32xf32>
    %303 = vector.extract_strided_slice %167 {offsets = [14, 0], sizes = [2, 128], strides = [1, 1]} : vector<16x128xf32> to vector<2x128xf32>
    %cst_48 = arith.constant dense<0.000000e+00> : vector<2x128xf32>
    %304 = tpu.matmul %302, %2, %cst_48 {dimension_numbers = #tpu.dot_dimension_numbers<[1], [0], [0], [1], [0, 0, 1, 1], [], []>} : vector<2x32xf32>, vector<32x128xf32>, vector<2x128xf32> -> vector<2x128xf32>
    %305 = arith.addf %303, %304 : vector<2x128xf32>
    %306 = vector.extract_strided_slice %305 {offsets = [0, 0], sizes = [2, 96], strides = [1, 1]} : vector<2x128xf32> to vector<2x96xf32>
    %307 = arith.negf %306 : vector<2x96xf32>
    %308 = math.exp %307 : vector<2x96xf32>
    %cst_49 = arith.constant 1.000000e+00 : f32
    %309 = vector.broadcast %cst_49 : f32 to vector<2x96xf32>
    %310 = arith.addf %309, %308 : vector<2x96xf32>
    %311 = arith.divf %309, %310 : vector<2x96xf32>
    %312 = vector.extract_strided_slice %305 {offsets = [0, 96], sizes = [2, 32], strides = [1, 1]} : vector<2x128xf32> to vector<2x32xf32>
    %313 = math.tanh %312 : vector<2x32xf32>
    %314 = vector.extract_strided_slice %311 {offsets = [0, 0], sizes = [2, 32], strides = [1, 1]} : vector<2x96xf32> to vector<2x32xf32>
    %315 = vector.extract_strided_slice %311 {offsets = [0, 32], sizes = [2, 32], strides = [1, 1]} : vector<2x96xf32> to vector<2x32xf32>
    %316 = vector.extract_strided_slice %311 {offsets = [0, 64], sizes = [2, 32], strides = [1, 1]} : vector<2x96xf32> to vector<2x32xf32>
    %317 = arith.mulf %315, %300 : vector<2x32xf32>
    %318 = arith.mulf %314, %313 : vector<2x32xf32>
    %319 = arith.addf %317, %318 : vector<2x32xf32>
    %320 = math.tanh %319 : vector<2x32xf32>
    %321 = arith.mulf %316, %320 : vector<2x32xf32>
    %322 = vector.extract_strided_slice %188 {offsets = [0, 0], sizes = [1, 32], strides = [1, 1]} : vector<2x32xf32> to vector<1x32xf32>
    %323 = vector.extract_strided_slice %207 {offsets = [0, 0], sizes = [1, 32], strides = [1, 1]} : vector<2x32xf32> to vector<1x32xf32>
    %324 = vector.extract_strided_slice %226 {offsets = [0, 0], sizes = [1, 32], strides = [1, 1]} : vector<2x32xf32> to vector<1x32xf32>
    %325 = vector.extract_strided_slice %245 {offsets = [0, 0], sizes = [1, 32], strides = [1, 1]} : vector<2x32xf32> to vector<1x32xf32>
    %326 = vector.extract_strided_slice %264 {offsets = [0, 0], sizes = [1, 32], strides = [1, 1]} : vector<2x32xf32> to vector<1x32xf32>
    %327 = vector.extract_strided_slice %283 {offsets = [0, 0], sizes = [1, 32], strides = [1, 1]} : vector<2x32xf32> to vector<1x32xf32>
    %328 = vector.extract_strided_slice %302 {offsets = [0, 0], sizes = [1, 32], strides = [1, 1]} : vector<2x32xf32> to vector<1x32xf32>
    %329 = vector.extract_strided_slice %321 {offsets = [0, 0], sizes = [1, 32], strides = [1, 1]} : vector<2x32xf32> to vector<1x32xf32>
    %330 = vector.extract_strided_slice %188 {offsets = [1, 0], sizes = [1, 32], strides = [1, 1]} : vector<2x32xf32> to vector<1x32xf32>
    %331 = vector.extract_strided_slice %207 {offsets = [1, 0], sizes = [1, 32], strides = [1, 1]} : vector<2x32xf32> to vector<1x32xf32>
    %332 = vector.extract_strided_slice %226 {offsets = [1, 0], sizes = [1, 32], strides = [1, 1]} : vector<2x32xf32> to vector<1x32xf32>
    %333 = vector.extract_strided_slice %245 {offsets = [1, 0], sizes = [1, 32], strides = [1, 1]} : vector<2x32xf32> to vector<1x32xf32>
    %334 = vector.extract_strided_slice %264 {offsets = [1, 0], sizes = [1, 32], strides = [1, 1]} : vector<2x32xf32> to vector<1x32xf32>
    %335 = vector.extract_strided_slice %283 {offsets = [1, 0], sizes = [1, 32], strides = [1, 1]} : vector<2x32xf32> to vector<1x32xf32>
    %336 = vector.extract_strided_slice %302 {offsets = [1, 0], sizes = [1, 32], strides = [1, 1]} : vector<2x32xf32> to vector<1x32xf32>
    %337 = vector.extract_strided_slice %321 {offsets = [1, 0], sizes = [1, 32], strides = [1, 1]} : vector<2x32xf32> to vector<1x32xf32>
    %338 = tpu.concatenate %322, %323, %324, %325, %326, %327, %328, %329, %330, %331, %332, %333, %334, %335, %336, %337 in 0 : vector<1x32xf32>, vector<1x32xf32>, vector<1x32xf32>, vector<1x32xf32>, vector<1x32xf32>, vector<1x32xf32>, vector<1x32xf32>, vector<1x32xf32>, vector<1x32xf32>, vector<1x32xf32>, vector<1x32xf32>, vector<1x32xf32>, vector<1x32xf32>, vector<1x32xf32>, vector<1x32xf32>, vector<1x32xf32> -> vector<16x32xf32>
    %c0_50 = arith.constant 0 : index
    %c0_51 = arith.constant 0 : index
    %339 = vector.load %arg7[%c0_50, %c0_51] : memref<32x50xf32, #tpu.memory_space<vmem>>, vector<32x50xf32>
    %cst_52 = arith.constant dense<0.000000e+00> : vector<16x50xf32>
    %340 = tpu.matmul %338, %339, %cst_52 {dimension_numbers = #tpu.dot_dimension_numbers<[1], [0], [0], [1], [0, 0, 1, 1], [], []>} : vector<16x32xf32>, vector<32x50xf32>, vector<16x50xf32> -> vector<16x50xf32>
    %c0_53 = arith.constant 0 : index
    %c0_54 = arith.constant 0 : index
    %341 = vector.load %arg8[%c0_53, %c0_54] : memref<1x50xf32, #tpu.memory_space<vmem>>, vector<1x50xf32>
    %342 = vector.broadcast %341 : vector<1x50xf32> to vector<16x50xf32>
    %343 = arith.addf %340, %342 : vector<16x50xf32>
    %c0_55 = arith.constant 0 : index
    %c0_56 = arith.constant 0 : index
    %344 = vector.load %arg9[%c0_55, %c0_56] : memref<16x50xf32, #tpu.memory_space<vmem>>, vector<16x50xf32>
    tpu.vector_store %arg9[%c0_55, %c0_56], %343 {strides = array<i32>} : memref<16x50xf32, #tpu.memory_space<vmem>>, vector<16x50xf32>,
    return
  }
}

</mosaic_0001>

<llo_original>
// kernel: lstm_generator_forward.1
$region0: #{lstm_generator_forward.1}
  #allocation0 [shape = 'u32[]', space=smem, size = 0x4, offset = 0x4, fixed_abs, tag = 'smem constant byte address 0x4 - core index']
  #allocation1 [shape = 'u32[144,128]{1,0:T(1,128)}', space=vmem, size = 0x12000, scoped, tag = 'internal scratch']
  %s0 = inlined_call_operand.vmem [shape: f32[16,16], index: 0, kind: input, shape index: {}]
  %s1 = inlined_call_operand.vmem [shape: f32[16,128], index: 1, kind: input, shape index: {}]
  %s2 = inlined_call_operand.vmem [shape: f32[32,128], index: 2, kind: input, shape index: {}]
  %s3 = inlined_call_operand.vmem [shape: f32[1,128], index: 3, kind: input, shape index: {}]
  %s4 = inlined_call_operand.vmem [shape: f32[32,128], index: 4, kind: input, shape index: {}]
  %s5 = inlined_call_operand.vmem [shape: f32[32,128], index: 5, kind: input, shape index: {}]
  %s6 = inlined_call_operand.vmem [shape: f32[1,128], index: 6, kind: input, shape index: {}]
  %s7 = inlined_call_operand.vmem [shape: f32[32,50], index: 7, kind: input, shape index: {}]
  %s8 = inlined_call_operand.vmem [shape: f32[1,50], index: 8, kind: input, shape index: {}]
  %s9 = inlined_call_operand.hbm [shape: f32[16,50], index: 9, kind: output, shape index: {}]
  %s10 = sld [smem:[#allocation0]]
  $region46: #{lstm_generator_forward.1} parent=0
    _
  %s12 = ssub.s32 1, %s10
  %s13 = scalar_select 0, %s12, %s10
  $region1: #{lstm_generator_forward.1} parent=0
    #allocation2 [shape = 'u8[8192]{0}', space=vmem, size = 0x2000, scoped, tag = 'output window, operand 0, single buffered']
    #allocation3 [shape = 's32[1]{0}', space=sflag, size = 0x4, scoped, tag = 'scoped memory for lstm_generator_forward.1']
    %14 = vsyncpa [#allocation3], 0
    // Predicated region
    $region2: #{lstm_generator_forward.1} parent=1 // pred_check
      _
    $region3: #{lstm_generator_forward.1} parent=1 // pred_check_branch
      %16 = sbr.rel (0) target = $region5
    $region4: #{lstm_generator_forward.1} parent=1 // pred_region
      _
    $region5: #{lstm_generator_forward.1} parent=1 // pred_fallthru
      _
    // Predicated region
    $region6: #{lstm_generator_forward.1} parent=1 // pred_check
      _
    $region7: #{lstm_generator_forward.1} parent=1 // pred_check_branch
      %18 = sbr.rel (0) target = $region9
    $region8: #{lstm_generator_forward.1} parent=1 // pred_region
      _
    $region9: #{lstm_generator_forward.1} parent=1 // pred_fallthru
      _
    // Predicated region
    $region10: #{lstm_generator_forward.1} parent=1 // pred_check
      _
    $region11: #{lstm_generator_forward.1} parent=1 // pred_check_branch
      %20 = sbr.rel (0) target = $region13
    $region12: #{lstm_generator_forward.1} parent=1 // pred_region
      _
    $region13: #{lstm_generator_forward.1} parent=1 // pred_fallthru
      _
    // Predicated region
    $region14: #{lstm_generator_forward.1} parent=1 // pred_check
      _
    $region15: #{lstm_generator_forward.1} parent=1 // pred_check_branch
      %22 = sbr.rel (0) target = $region17
    $region16: #{lstm_generator_forward.1} parent=1 // pred_region
      _
    $region17: #{lstm_generator_forward.1} parent=1 // pred_fallthru
      _
    // Predicated region
    $region18: #{lstm_generator_forward.1} parent=1 // pred_check
      _
    $region19: #{lstm_generator_forward.1} parent=1 // pred_check_branch
      %24 = sbr.rel (0) target = $region21
    $region20: #{lstm_generator_forward.1} parent=1 // pred_region
      _
    $region21: #{lstm_generator_forward.1} parent=1 // pred_fallthru
      _
    // Predicated region
    $region22: #{lstm_generator_forward.1} parent=1 // pred_check
      _
    $region23: #{lstm_generator_forward.1} parent=1 // pred_check_branch
      %26 = sbr.rel (0) target = $region25
    $region24: #{lstm_generator_forward.1} parent=1 // pred_region
      _
    $region25: #{lstm_generator_forward.1} parent=1 // pred_fallthru
      _
    // Predicated region
    $region26: #{lstm_generator_forward.1} parent=1 // pred_check
      _
    $region27: #{lstm_generator_forward.1} parent=1 // pred_check_branch
      %28 = sbr.rel (0) target = $region29
    $region28: #{lstm_generator_forward.1} parent=1 // pred_region
      _
    $region29: #{lstm_generator_forward.1} parent=1 // pred_fallthru
      _
    // Predicated region
    $region30: #{lstm_generator_forward.1} parent=1 // pred_check
      _
    $region31: #{lstm_generator_forward.1} parent=1 // pred_check_branch
      %30 = sbr.rel (0) target = $region33
    $region32: #{lstm_generator_forward.1} parent=1 // pred_region
      _
    $region33: #{lstm_generator_forward.1} parent=1 // pred_fallthru
      _
    // Predicated region
    $region34: #{lstm_generator_forward.1} parent=1 // pred_check
      _
    $region35: #{lstm_generator_forward.1} parent=1 // pred_check_branch
      %32 = sbr.rel (0) target = $region37
    $region36: #{lstm_generator_forward.1} parent=1 // pred_region
      _
    $region37: #{lstm_generator_forward.1} parent=1 // pred_fallthru
      _
    %v33 = vld [vmem:[%s0] sm:$0xff]
    %v34 = vld [vmem:[%s0 + $0x8] sm:$0xff]
    %v35 = vld [vmem:[%s2] sm:$0xff]
    %v36 = vld [vmem:[%s2 + $0x8] sm:$0xff]
    %v37 = vld [vmem:[%s2 + $0x10] sm:$0xff]
    %v38 = vld [vmem:[%s2 + $0x18] sm:$0xff]
    %v39 = vld [vmem:[%s5] sm:$0xff]
    %v40 = vld [vmem:[%s5 + $0x8] sm:$0xff]
    %v41 = vld [vmem:[%s5 + $0x10] sm:$0xff]
    %v42 = vld [vmem:[%s5 + $0x18] sm:$0xff]
    %v43 = vld [vmem:[%s1] sm:$0xff]
    %v44 = vld [vmem:[%s1 + $0x8] sm:$0xff]
    %v45 = vld [vmem:[%s3] sm:$0x1]
    %v47 = vlaneseq
    %v48 = vshrl.u32 %v47, 7
    %v49 = vsub.s32 0, %v48
    %v50 = vrot.slane %v45, %v49
    %vm52 = vcmask 130048
    %v54 = vsel %vm52, %v33, 0
    %v57 = vsel %vm52, %v34, 0
    %59 = vmatprep.subr.mxu0 0.0
    %60 = vmatpush1.msra.mxu0 %v43
    %61 = vmatprep.subr.mxu0 0.0
    %62 = vmatpush1.msra.mxu0 %v44
    %63 = vmatprep.subr.mxu0 0.0
    %64 = vmatpush1.msra.mxu0 0.0
    %65 = vmatprep.subr.mxu0 0.0
    %66 = vmatpush1.msra.mxu0 0.0
    %67 = vmatprep.subr.mxu0 0.0
    %68 = vmatpush1.msra.mxu0 0.0
    %69 = vmatprep.subr.mxu0 0.0
    %70 = vmatpush1.msra.mxu0 0.0
    %71 = vmatprep.subr.mxu0 0.0
    %72 = vmatpush1.msra.mxu0 0.0
    %73 = vmatprep.subr.mxu0 0.0
    %74 = vmatpush1.msra.mxu0 0.0
    %75 = vmatprep.subr.mxu0 0.0
    %76 = vmatpush1.msra.mxu0 0.0
    %77 = vmatprep.subr.mxu0 0.0
    %78 = vmatpush1.msra.mxu0 0.0
    %79 = vmatprep.subr.mxu0 0.0
    %80 = vmatpush1.msra.mxu0 0.0
    %81 = vmatprep.subr.mxu0 0.0
    %82 = vmatpush1.msra.mxu0 0.0
    %83 = vmatprep.subr.mxu0 0.0
    %84 = vmatpush1.msra.mxu0 0.0
    %85 = vmatprep.subr.mxu0 0.0
    %86 = vmatpush1.msra.mxu0 0.0
    %87 = vmatprep.subr.mxu0 0.0
    %88 = vmatpush1.msra.mxu0 0.0
    %89 = vmatprep.subr.mxu0 0.0
    %90 = vmatpush1.msra.mxu0 0.0
    %91 = vmatprep.subr.mxu0 0.0
    %92 = vmatpush1.msra.mxu0 0.0
    %93 = vmatprep.subr.mxu0 0.0
    %94 = vmatpush1.msra.mxu0 0.0
    %95 = vmatprep.subr.mxu0 0.0
    %96 = vmatpush1.msra.mxu0 0.0
    %97 = vmatprep.subr.mxu0 0.0
    %98 = vmatpush1.msra.mxu0 0.0
    %99 = vmatprep.subr.mxu0 0.0
    %100 = vmatpush1.msra.mxu0 0.0
    %101 = vmatprep.subr.mxu0 0.0
    %102 = vmatpush1.msra.mxu0 0.0
    %103 = vmatprep.subr.mxu0 0.0
    %104 = vmatpush1.msra.mxu0 0.0
    %105 = vmatprep.subr.mxu0 0.0
    %106 = vmatpush1.msra.mxu0 0.0
    %107 = vmatprep.subr.mxu0 0.0
    %108 = vmatpush1.msra.mxu0 0.0
    %109 = vmatprep.subr.mxu0 0.0
    %110 = vmatpush1.msra.mxu0 0.0
    %111 = vmatprep.subr.mxu0 0.0
    %112 = vmatpush1.msra.mxu0 0.0
    %113 = vmatprep.subr.mxu0 0.0
    %114 = vmatpush1.msra.mxu0 0.0
    %115 = vmatprep.subr.mxu0 0.0
    %116 = vmatpush1.msra.mxu0 0.0
    %117 = vmatprep.subr.mxu0 0.0
    %118 = vmatpush1.msra.mxu0 0.0
    %119 = vmatprep.subr.mxu0 0.0
    %120 = vmatpush1.msra.mxu0 0.0
    %121 = vmatprep.subr.mxu0 0.0
    %122 = vmatpush1.msra.mxu0 0.0
    %123 = vmatprep.mubr.f32.mxu0 0.0
    %124 = vmatmul.mubr.f32.gmra.mrb[0].mxu0 %v54
    %v125 = vpop.f32.mrb[0].mxu0
    %v126 = vadd.f32 %v50, %v125
    %v127 = vpop.f32.mrb[0].mxu0
    %128 = vmatprep.mubr.f32.mxu0 0.0
    %129 = vmatmul.mubr.f32.gmra.mrb[0].mxu0 %v57
    %v130 = vpop.f32.mrb[0].mxu0
    %v131 = vadd.f32 %v50, %v130
    %v132 = vpop.f32.mrb[0].mxu0
    %133 = vdwg.mxu0
    %vm134 = vcmask 261120
    %v136 = vsel %vm134, 0.0, 0
    %138 = vmatprep.subr.mxu0 0.0
    %139 = vmatpush1.msra.mxu0 %v35
    %140 = vmatprep.subr.mxu0 0.0
    %141 = vmatpush1.msra.mxu0 %v36
    %142 = vmatprep.subr.mxu0 0.0
    %143 = vmatpush1.msra.mxu0 %v37
    %144 = vmatprep.subr.mxu0 0.0
    %145 = vmatpush1.msra.mxu0 %v38
    %146 = vmatprep.subr.mxu0 0.0
    %147 = vmatpush1.msra.mxu0 0.0
    %148 = vmatprep.subr.mxu0 0.0
    %149 = vmatpush1.msra.mxu0 0.0
    %150 = vmatprep.subr.mxu0 0.0
    %151 = vmatpush1.msra.mxu0 0.0
    %152 = vmatprep.subr.mxu0 0.0
    %153 = vmatpush1.msra.mxu0 0.0
    %154 = vmatprep.subr.mxu0 0.0
    %155 = vmatpush1.msra.mxu0 0.0
    %156 = vmatprep.subr.mxu0 0.0
    %157 = vmatpush1.msra.mxu0 0.0
    %158 = vmatprep.subr.mxu0 0.0
    %159 = vmatpush1.msra.mxu0 0.0
    %160 = vmatprep.subr.mxu0 0.0
    %161 = vmatpush1.msra.mxu0 0.0
    %162 = vmatprep.subr.mxu0 0.0
    %163 = vmatpush1.msra.mxu0 0.0
    %164 = vmatprep.subr.mxu0 0.0
    %165 = vmatpush1.msra.mxu0 0.0
    %166 = vmatprep.subr.mxu0 0.0
    %167 = vmatpush1.msra.mxu0 0.0
    %168 = vmatprep.subr.mxu0 0.0
    %169 = vmatpush1.msra.mxu0 0.0
    %170 = vmatprep.subr.mxu0 0.0
    %171 = vmatpush1.msra.mxu0 0.0
    %172 = vmatprep.subr.mxu0 0.0
    %173 = vmatpush1.msra.mxu0 0.0
    %174 = vmatprep.subr.mxu0 0.0
    %175 = vmatpush1.msra.mxu0 0.0
    %176 = vmatprep.subr.mxu0 0.0
    %177 = vmatpush1.msra.mxu0 0.0
    %178 = vmatprep.subr.mxu0 0.0
    %179 = vmatpush1.msra.mxu0 0.0
    %180 = vmatprep.subr.mxu0 0.0
    %181 = vmatpush1.msra.mxu0 0.0
    %182 = vmatprep.subr.mxu0 0.0
    %183 = vmatpush1.msra.mxu0 0.0
    %184 = vmatprep.subr.mxu0 0.0
    %185 = vmatpush1.msra.mxu0 0.0
    %186 = vmatprep.subr.mxu0 0.0
    %187 = vmatpush1.msra.mxu0 0.0
    %188 = vmatprep.subr.mxu0 0.0
    %189 = vmatpush1.msra.mxu0 0.0
    %190 = vmatprep.subr.mxu0 0.0
    %191 = vmatpush1.msra.mxu0 0.0
    %192 = vmatprep.subr.mxu0 0.0
    %193 = vmatpush1.msra.mxu0 0.0
    %194 = vmatprep.subr.mxu0 0.0
    %195 = vmatpush1.msra.mxu0 0.0
    %196 = vmatprep.subr.mxu0 0.0
    %197 = vmatpush1.msra.mxu0 0.0
    %198 = vmatprep.subr.mxu0 0.0
    %199 = vmatpush1.msra.mxu0 0.0
    %200 = vmatprep.subr.mxu0 0.0
    %201 = vmatpush1.msra.mxu0 0.0
    %202 = vmatprep.mubr.f32.mxu0 0.0
    %203 = vmatmul.mubr.f32.gmra.mrb[0].mxu0 %v136
    %v204 = vpop.f32.mrb[0].mxu0
    %v205 = vadd.f32 0.0, %v204
    %v206 = vpop.f32.mrb[0].mxu0
    %207 = vdwg.mxu0
    %v208 = vadd.f32 %v126, %v205
    %v209 = vxor.u32 %v208, 2147483648
    %v210 = vmul.f32 %v209, 1.442695
    %v211 = vpow.pop %v210
    %v212 = vadd.f32 %v211, 1.0
    %v213 = vrcp.pop %v212
    %v214 = vmul.f32 1.0, %v213
    %v215 = vtanh.pop %v208
    %v216 = vmul.f32 %v214, 0.0
    %218 = vrot.lane.b32.xlu0 %v215, 32
    %v219 = vpop.permute.xlu0 %218
    %v221 = vmul.f32 %v214, %v219
    %223 = vrot.lane.b32.xlu0 %v221, 32
    %v224 = vpop.permute.xlu0 %223
    %v226 = vadd.f32 %v216, %v224
    %v227 = vtanh.pop %v226
    %229 = vrot.lane.b32.xlu0 %v227, 32
    %v230 = vpop.permute.xlu0 %229
    %v232 = vmul.f32 %v214, %v230
    %234 = vrot.lane.b32.xlu0 %v232, 64
    %v235 = vpop.permute.xlu0 %234
    %v236 = vsel %vm134, %v235, 0
    %238 = vmatprep.subr.mxu0 0.0
    %239 = vmatpush1.msra.mxu0 %v35
    %240 = vmatprep.subr.mxu0 0.0
    %241 = vmatpush1.msra.mxu0 %v36
    %242 = vmatprep.subr.mxu0 0.0
    %243 = vmatpush1.msra.mxu0 %v37
    %244 = vmatprep.subr.mxu0 0.0
    %245 = vmatpush1.msra.mxu0 %v38
    %246 = vmatprep.subr.mxu0 0.0
    %247 = vmatpush1.msra.mxu0 0.0
    %248 = vmatprep.subr.mxu0 0.0
    %249 = vmatpush1.msra.mxu0 0.0
    %250 = vmatprep.subr.mxu0 0.0
    %251 = vmatpush1.msra.mxu0 0.0
    %252 = vmatprep.subr.mxu0 0.0
    %253 = vmatpush1.msra.mxu0 0.0
    %254 = vmatprep.subr.mxu0 0.0
    %255 = vmatpush1.msra.mxu0 0.0
    %256 = vmatprep.subr.mxu0 0.0
    %257 = vmatpush1.msra.mxu0 0.0
    %258 = vmatprep.subr.mxu0 0.0
    %259 = vmatpush1.msra.mxu0 0.0
    %260 = vmatprep.subr.mxu0 0.0
    %261 = vmatpush1.msra.mxu0 0.0
    %262 = vmatprep.subr.mxu0 0.0
    %263 = vmatpush1.msra.mxu0 0.0
    %264 = vmatprep.subr.mxu0 0.0
    %265 = vmatpush1.msra.mxu0 0.0
    %266 = vmatprep.subr.mxu0 0.0
    %267 = vmatpush1.msra.mxu0 0.0
    %268 = vmatprep.subr.mxu0 0.0
    %269 = vmatpush1.msra.mxu0 0.0
    %270 = vmatprep.subr.mxu0 0.0
    %271 = vmatpush1.msra.mxu0 0.0
    %272 = vmatprep.subr.mxu0 0.0
    %273 = vmatpush1.msra.mxu0 0.0
    %274 = vmatprep.subr.mxu0 0.0
    %275 = vmatpush1.msra.mxu0 0.0
    %276 = vmatprep.subr.mxu0 0.0
    %277 = vmatpush1.msra.mxu0 0.0
    %278 = vmatprep.subr.mxu0 0.0
    %279 = vmatpush1.msra.mxu0 0.0
    %280 = vmatprep.subr.mxu0 0.0
    %281 = vmatpush1.msra.mxu0 0.0
    %282 = vmatprep.subr.mxu0 0.0
    %283 = vmatpush1.msra.mxu0 0.0
    %284 = vmatprep.subr.mxu0 0.0
    %285 = vmatpush1.msra.mxu0 0.0
    %286 = vmatprep.subr.mxu0 0.0
    %287 = vmatpush1.msra.mxu0 0.0
    %288 = vmatprep.subr.mxu0 0.0
    %289 = vmatpush1.msra.mxu0 0.0
    %290 = vmatprep.subr.mxu0 0.0
    %291 = vmatpush1.msra.mxu0 0.0
    %292 = vmatprep.subr.mxu0 0.0
    %293 = vmatpush1.msra.mxu0 0.0
    %294 = vmatprep.subr.mxu0 0.0
    %295 = vmatpush1.msra.mxu0 0.0
    %296 = vmatprep.subr.mxu0 0.0
    %297 = vmatpush1.msra.mxu0 0.0
    %298 = vmatprep.subr.mxu0 0.0
    %299 = vmatpush1.msra.mxu0 0.0
    %300 = vmatprep.subr.mxu0 0.0
    %301 = vmatpush1.msra.mxu0 0.0
    %302 = vmatprep.mubr.f32.mxu0 0.0
    %303 = vmatmul.mubr.f32.gmra.mrb[0].mxu0 %v236
    %v304 = vpop.f32.mrb[0].mxu0
    %v305 = vadd.f32 0.0, %v304
    %v306 = vpop.f32.mrb[0].mxu0
    %307 = vdwg.mxu0
    %v309 = vrot.slane %v305, 6
    %v311 = vadd.f32 %v126, %v309
    %v312 = vxor.u32 %v311, 2147483648
    %v313 = vmul.f32 %v312, 1.442695
    %v314 = vpow.pop %v313
    %v315 = vadd.f32 %v314, 1.0
    %v316 = vrcp.pop %v315
    %v317 = vmul.f32 1.0, %v316
    %v318 = vtanh.pop %v311
    %v320 = vrot.slane %v226, 6
    %v322 = vmul.f32 %v317, %v320
    %324 = vrot.lane.b32.xlu0 %v318, 32
    %v325 = vpop.permute.xlu0 %324
    %v327 = vmul.f32 %v317, %v325
    %329 = vrot.lane.b32.xlu0 %v327, 32
    %v330 = vpop.permute.xlu0 %329
    %v332 = vadd.f32 %v322, %v330
    %v333 = vtanh.pop %v332
    %335 = vrot.lane.b32.xlu0 %v333, 32
    %v336 = vpop.permute.xlu0 %335
    %v338 = vmul.f32 %v317, %v336
    %v340 = vrot.slane %v338, 2
    %341 = vrot.lane.b32.xlu0 %v340, 64
    %v342 = vpop.permute.xlu0 %341
    %v343 = vsel %vm134, %v342, 0
    %345 = vmatprep.subr.mxu0 0.0
    %346 = vmatpush1.msra.mxu0 %v35
    %347 = vmatprep.subr.mxu0 0.0
    %348 = vmatpush1.msra.mxu0 %v36
    %349 = vmatprep.subr.mxu0 0.0
    %350 = vmatpush1.msra.mxu0 %v37
    %351 = vmatprep.subr.mxu0 0.0
    %352 = vmatpush1.msra.mxu0 %v38
    %353 = vmatprep.subr.mxu0 0.0
    %354 = vmatpush1.msra.mxu0 0.0
    %355 = vmatprep.subr.mxu0 0.0
    %356 = vmatpush1.msra.mxu0 0.0
    %357 = vmatprep.subr.mxu0 0.0
    %358 = vmatpush1.msra.mxu0 0.0
    %359 = vmatprep.subr.mxu0 0.0
    %360 = vmatpush1.msra.mxu0 0.0
    %361 = vmatprep.subr.mxu0 0.0
    %362 = vmatpush1.msra.mxu0 0.0
    %363 = vmatprep.subr.mxu0 0.0
    %364 = vmatpush1.msra.mxu0 0.0
    %365 = vmatprep.subr.mxu0 0.0
    %366 = vmatpush1.msra.mxu0 0.0
    %367 = vmatprep.subr.mxu0 0.0
    %368 = vmatpush1.msra.mxu0 0.0
    %369 = vmatprep.subr.mxu0 0.0
    %370 = vmatpush1.msra.mxu0 0.0
    %371 = vmatprep.subr.mxu0 0.0
    %372 = vmatpush1.msra.mxu0 0.0
    %373 = vmatprep.subr.mxu0 0.0
    %374 = vmatpush1.msra.mxu0 0.0
    %375 = vmatprep.subr.mxu0 0.0
    %376 = vmatpush1.msra.mxu0 0.0
    %377 = vmatprep.subr.mxu0 0.0
    %378 = vmatpush1.msra.mxu0 0.0
    %379 = vmatprep.subr.mxu0 0.0
    %380 = vmatpush1.msra.mxu0 0.0
    %381 = vmatprep.subr.mxu0 0.0
    %382 = vmatpush1.msra.mxu0 0.0
    %383 = vmatprep.subr.mxu0 0.0
    %384 = vmatpush1.msra.mxu0 0.0
    %385 = vmatprep.subr.mxu0 0.0
    %386 = vmatpush1.msra.mxu0 0.0
    %387 = vmatprep.subr.mxu0 0.0
    %388 = vmatpush1.msra.mxu0 0.0
    %389 = vmatprep.subr.mxu0 0.0
    %390 = vmatpush1.msra.mxu0 0.0
    %391 = vmatprep.subr.mxu0 0.0
    %392 = vmatpush1.msra.mxu0 0.0
    %393 = vmatprep.subr.mxu0 0.0
    %394 = vmatpush1.msra.mxu0 0.0
    %395 = vmatprep.subr.mxu0 0.0
    %396 = vmatpush1.msra.mxu0 0.0
    %397 = vmatprep.subr.mxu0 0.0
    %398 = vmatpush1.msra.mxu0 0.0
    %399 = vmatprep.subr.mxu0 0.0
    %400 = vmatpush1.msra.mxu0 0.0
    %401 = vmatprep.subr.mxu0 0.0
    %402 = vmatpush1.msra.mxu0 0.0
    %403 = vmatprep.subr.mxu0 0.0
    %404 = vmatpush1.msra.mxu0 0.0
    %405 = vmatprep.subr.mxu0 0.0
    %406 = vmatpush1.msra.mxu0 0.0
    %407 = vmatprep.subr.mxu0 0.0
    %408 = vmatpush1.msra.mxu0 0.0
    %409 = vmatprep.mubr.f32.mxu0 0.0
    %410 = vmatmul.mubr.f32.gmra.mrb[0].mxu0 %v343
    %v411 = vpop.f32.mrb[0].mxu0
    %v412 = vadd.f32 0.0, %v411
    %v413 = vpop.f32.mrb[0].mxu0
    %414 = vdwg.mxu0
    %v416 = vrot.slane %v412, 4
    %v418 = vadd.f32 %v126, %v416
    %v419 = vxor.u32 %v418, 2147483648
    %v420 = vmul.f32 %v419, 1.442695
    %v421 = vpow.pop %v420
    %v422 = vadd.f32 %v421, 1.0
    %v423 = vrcp.pop %v422
    %v424 = vmul.f32 1.0, %v423
    %v425 = vtanh.pop %v418
    %v427 = vrot.slane %v332, 6
    %v429 = vmul.f32 %v424, %v427
    %431 = vrot.lane.b32.xlu0 %v425, 32
    %v432 = vpop.permute.xlu0 %431
    %v434 = vmul.f32 %v424, %v432
    %436 = vrot.lane.b32.xlu0 %v434, 32
    %v437 = vpop.permute.xlu0 %436
    %v439 = vadd.f32 %v429, %v437
    %v440 = vtanh.pop %v439
    %442 = vrot.lane.b32.xlu0 %v440, 32
    %v443 = vpop.permute.xlu0 %442
    %v445 = vmul.f32 %v424, %v443
    %v447 = vrot.slane %v445, 4
    %448 = vrot.lane.b32.xlu0 %v447, 64
    %v449 = vpop.permute.xlu0 %448
    %v450 = vsel %vm134, %v449, 0
    %452 = vmatprep.subr.mxu0 0.0
    %453 = vmatpush1.msra.mxu0 %v35
    %454 = vmatprep.subr.mxu0 0.0
    %455 = vmatpush1.msra.mxu0 %v36
    %456 = vmatprep.subr.mxu0 0.0
    %457 = vmatpush1.msra.mxu0 %v37
    %458 = vmatprep.subr.mxu0 0.0
    %459 = vmatpush1.msra.mxu0 %v38
    %460 = vmatprep.subr.mxu0 0.0
    %461 = vmatpush1.msra.mxu0 0.0
    %462 = vmatprep.subr.mxu0 0.0
    %463 = vmatpush1.msra.mxu0 0.0
    %464 = vmatprep.subr.mxu0 0.0
    %465 = vmatpush1.msra.mxu0 0.0
    %466 = vmatprep.subr.mxu0 0.0
    %467 = vmatpush1.msra.mxu0 0.0
    %468 = vmatprep.subr.mxu0 0.0
    %469 = vmatpush1.msra.mxu0 0.0
    %470 = vmatprep.subr.mxu0 0.0
    %471 = vmatpush1.msra.mxu0 0.0
    %472 = vmatprep.subr.mxu0 0.0
    %473 = vmatpush1.msra.mxu0 0.0
    %474 = vmatprep.subr.mxu0 0.0
    %475 = vmatpush1.msra.mxu0 0.0
    %476 = vmatprep.subr.mxu0 0.0
    %477 = vmatpush1.msra.mxu0 0.0
    %478 = vmatprep.subr.mxu0 0.0
    %479 = vmatpush1.msra.mxu0 0.0
    %480 = vmatprep.subr.mxu0 0.0
    %481 = vmatpush1.msra.mxu0 0.0
    %482 = vmatprep.subr.mxu0 0.0
    %483 = vmatpush1.msra.mxu0 0.0
    %484 = vmatprep.subr.mxu0 0.0
    %485 = vmatpush1.msra.mxu0 0.0
    %486 = vmatprep.subr.mxu0 0.0
    %487 = vmatpush1.msra.mxu0 0.0
    %488 = vmatprep.subr.mxu0 0.0
    %489 = vmatpush1.msra.mxu0 0.0
    %490 = vmatprep.subr.mxu0 0.0
    %491 = vmatpush1.msra.mxu0 0.0
    %492 = vmatprep.subr.mxu0 0.0
    %493 = vmatpush1.msra.mxu0 0.0
    %494 = vmatprep.subr.mxu0 0.0
    %495 = vmatpush1.msra.mxu0 0.0
    %496 = vmatprep.subr.mxu0 0.0
    %497 = vmatpush1.msra.mxu0 0.0
    %498 = vmatprep.subr.mxu0 0.0
    %499 = vmatpush1.msra.mxu0 0.0
    %500 = vmatprep.subr.mxu0 0.0
    %501 = vmatpush1.msra.mxu0 0.0
    %502 = vmatprep.subr.mxu0 0.0
    %503 = vmatpush1.msra.mxu0 0.0
    %504 = vmatprep.subr.mxu0 0.0
    %505 = vmatpush1.msra.mxu0 0.0
    %506 = vmatprep.subr.mxu0 0.0
    %507 = vmatpush1.msra.mxu0 0.0
    %508 = vmatprep.subr.mxu0 0.0
    %509 = vmatpush1.msra.mxu0 0.0
    %510 = vmatprep.subr.mxu0 0.0
    %511 = vmatpush1.msra.mxu0 0.0
    %512 = vmatprep.subr.mxu0 0.0
    %513 = vmatpush1.msra.mxu0 0.0
    %514 = vmatprep.subr.mxu0 0.0
    %515 = vmatpush1.msra.mxu0 0.0
    %516 = vmatprep.mubr.f32.mxu0 0.0
    %517 = vmatmul.mubr.f32.gmra.mrb[0].mxu0 %v450
    %v518 = vpop.f32.mrb[0].mxu0
    %v519 = vadd.f32 0.0, %v518
    %v520 = vpop.f32.mrb[0].mxu0
    %521 = vdwg.mxu0
    %v523 = vrot.slane %v519, 2
    %v525 = vadd.f32 %v126, %v523
    %v526 = vxor.u32 %v525, 2147483648
    %v527 = vmul.f32 %v526, 1.442695
    %v528 = vpow.pop %v527
    %v529 = vadd.f32 %v528, 1.0
    %v530 = vrcp.pop %v529
    %v531 = vmul.f32 1.0, %v530
    %v532 = vtanh.pop %v525
    %v534 = vrot.slane %v439, 6
    %v536 = vmul.f32 %v531, %v534
    %538 = vrot.lane.b32.xlu0 %v532, 32
    %v539 = vpop.permute.xlu0 %538
    %v541 = vmul.f32 %v531, %v539
    %543 = vrot.lane.b32.xlu0 %v541, 32
    %v544 = vpop.permute.xlu0 %543
    %v546 = vadd.f32 %v536, %v544
    %v547 = vtanh.pop %v546
    %549 = vrot.lane.b32.xlu0 %v547, 32
    %v550 = vpop.permute.xlu0 %549
    %v552 = vmul.f32 %v531, %v550
    %v554 = vrot.slane %v552, 6
    %555 = vrot.lane.b32.xlu0 %v554, 64
    %v556 = vpop.permute.xlu0 %555
    %v557 = vsel %vm134, %v556, 0
    %559 = vmatprep.subr.mxu0 0.0
    %560 = vmatpush1.msra.mxu0 %v35
    %561 = vmatprep.subr.mxu0 0.0
    %562 = vmatpush1.msra.mxu0 %v36
    %563 = vmatprep.subr.mxu0 0.0
    %564 = vmatpush1.msra.mxu0 %v37
    %565 = vmatprep.subr.mxu0 0.0
    %566 = vmatpush1.msra.mxu0 %v38
    %567 = vmatprep.subr.mxu0 0.0
    %568 = vmatpush1.msra.mxu0 0.0
    %569 = vmatprep.subr.mxu0 0.0
    %570 = vmatpush1.msra.mxu0 0.0
    %571 = vmatprep.subr.mxu0 0.0
    %572 = vmatpush1.msra.mxu0 0.0
    %573 = vmatprep.subr.mxu0 0.0
    %574 = vmatpush1.msra.mxu0 0.0
    %575 = vmatprep.subr.mxu0 0.0
    %576 = vmatpush1.msra.mxu0 0.0
    %577 = vmatprep.subr.mxu0 0.0
    %578 = vmatpush1.msra.mxu0 0.0
    %579 = vmatprep.subr.mxu0 0.0
    %580 = vmatpush1.msra.mxu0 0.0
    %581 = vmatprep.subr.mxu0 0.0
    %582 = vmatpush1.msra.mxu0 0.0
    %583 = vmatprep.subr.mxu0 0.0
    %584 = vmatpush1.msra.mxu0 0.0
    %585 = vmatprep.subr.mxu0 0.0
    %586 = vmatpush1.msra.mxu0 0.0
    %587 = vmatprep.subr.mxu0 0.0
    %588 = vmatpush1.msra.mxu0 0.0
    %589 = vmatprep.subr.mxu0 0.0
    %590 = vmatpush1.msra.mxu0 0.0
    %591 = vmatprep.subr.mxu0 0.0
    %592 = vmatpush1.msra.mxu0 0.0
    %593 = vmatprep.subr.mxu0 0.0
    %594 = vmatpush1.msra.mxu0 0.0
    %595 = vmatprep.subr.mxu0 0.0
    %596 = vmatpush1.msra.mxu0 0.0
    %597 = vmatprep.subr.mxu0 0.0
    %598 = vmatpush1.msra.mxu0 0.0
    %599 = vmatprep.subr.mxu0 0.0
    %600 = vmatpush1.msra.mxu0 0.0
    %601 = vmatprep.subr.mxu0 0.0
    %602 = vmatpush1.msra.mxu0 0.0
    %603 = vmatprep.subr.mxu0 0.0
    %604 = vmatpush1.msra.mxu0 0.0
    %605 = vmatprep.subr.mxu0 0.0
    %606 = vmatpush1.msra.mxu0 0.0
    %607 = vmatprep.subr.mxu0 0.0
    %608 = vmatpush1.msra.mxu0 0.0
    %609 = vmatprep.subr.mxu0 0.0
    %610 = vmatpush1.msra.mxu0 0.0
    %611 = vmatprep.subr.mxu0 0.0
    %612 = vmatpush1.msra.mxu0 0.0
    %613 = vmatprep.subr.mxu0 0.0
    %614 = vmatpush1.msra.mxu0 0.0
    %615 = vmatprep.subr.mxu0 0.0
    %616 = vmatpush1.msra.mxu0 0.0
    %617 = vmatprep.subr.mxu0 0.0
    %618 = vmatpush1.msra.mxu0 0.0
    %619 = vmatprep.subr.mxu0 0.0
    %620 = vmatpush1.msra.mxu0 0.0
    %621 = vmatprep.subr.mxu0 0.0
    %622 = vmatpush1.msra.mxu0 0.0
    %623 = vmatprep.mubr.f32.mxu0 0.0
    %624 = vmatmul.mubr.f32.gmra.mrb[0].mxu0 %v557
    %v625 = vpop.f32.mrb[0].mxu0
    %v626 = vadd.f32 0.0, %v625
    %v627 = vpop.f32.mrb[0].mxu0
    %628 = vdwg.mxu0
    %v629 = vadd.f32 %v131, %v626
    %v630 = vxor.u32 %v629, 2147483648
    %v631 = vmul.f32 %v630, 1.442695
    %v632 = vpow.pop %v631
    %v633 = vadd.f32 %v632, 1.0
    %v634 = vrcp.pop %v633
    %v635 = vmul.f32 1.0, %v634
    %v636 = vtanh.pop %v629
    %v638 = vrot.slane %v546, 6
    %v640 = vmul.f32 %v635, %v638
    %642 = vrot.lane.b32.xlu0 %v636, 32
    %v643 = vpop.permute.xlu0 %642
    %v645 = vmul.f32 %v635, %v643
    %647 = vrot.lane.b32.xlu0 %v645, 32
    %v648 = vpop.permute.xlu0 %647
    %v650 = vadd.f32 %v640, %v648
    %v651 = vtanh.pop %v650
    %653 = vrot.lane.b32.xlu0 %v651, 32
    %v654 = vpop.permute.xlu0 %653
    %v656 = vmul.f32 %v635, %v654
    %658 = vrot.lane.b32.xlu0 %v656, 64
    %v659 = vpop.permute.xlu0 %658
    %v660 = vsel %vm134, %v659, 0
    %662 = vmatprep.subr.mxu0 0.0
    %663 = vmatpush1.msra.mxu0 %v35
    %664 = vmatprep.subr.mxu0 0.0
    %665 = vmatpush1.msra.mxu0 %v36
    %666 = vmatprep.subr.mxu0 0.0
    %667 = vmatpush1.msra.mxu0 %v37
    %668 = vmatprep.subr.mxu0 0.0
    %669 = vmatpush1.msra.mxu0 %v38
    %670 = vmatprep.subr.mxu0 0.0
    %671 = vmatpush1.msra.mxu0 0.0
    %672 = vmatprep.subr.mxu0 0.0
    %673 = vmatpush1.msra.mxu0 0.0
    %674 = vmatprep.subr.mxu0 0.0
    %675 = vmatpush1.msra.mxu0 0.0
    %676 = vmatprep.subr.mxu0 0.0
    %677 = vmatpush1.msra.mxu0 0.0
    %678 = vmatprep.subr.mxu0 0.0
    %679 = vmatpush1.msra.mxu0 0.0
    %680 = vmatprep.subr.mxu0 0.0
    %681 = vmatpush1.msra.mxu0 0.0
    %682 = vmatprep.subr.mxu0 0.0
    %683 = vmatpush1.msra.mxu0 0.0
    %684 = vmatprep.subr.mxu0 0.0
    %685 = vmatpush1.msra.mxu0 0.0
    %686 = vmatprep.subr.mxu0 0.0
    %687 = vmatpush1.msra.mxu0 0.0
    %688 = vmatprep.subr.mxu0 0.0
    %689 = vmatpush1.msra.mxu0 0.0
    %690 = vmatprep.subr.mxu0 0.0
    %691 = vmatpush1.msra.mxu0 0.0
    %692 = vmatprep.subr.mxu0 0.0
    %693 = vmatpush1.msra.mxu0 0.0
    %694 = vmatprep.subr.mxu0 0.0
    %695 = vmatpush1.msra.mxu0 0.0
    %696 = vmatprep.subr.mxu0 0.0
    %697 = vmatpush1.msra.mxu0 0.0
    %698 = vmatprep.subr.mxu0 0.0
    %699 = vmatpush1.msra.mxu0 0.0
    %700 = vmatprep.subr.mxu0 0.0
    %701 = vmatpush1.msra.mxu0 0.0
    %702 = vmatprep.subr.mxu0 0.0
    %703 = vmatpush1.msra.mxu0 0.0
    %704 = vmatprep.subr.mxu0 0.0
    %705 = vmatpush1.msra.mxu0 0.0
    %706 = vmatprep.subr.mxu0 0.0
    %707 = vmatpush1.msra.mxu0 0.0
    %708 = vmatprep.subr.mxu0 0.0
    %709 = vmatpush1.msra.mxu0 0.0
    %710 = vmatprep.subr.mxu0 0.0
    %711 = vmatpush1.msra.mxu0 0.0
    %712 = vmatprep.subr.mxu0 0.0
    %713 = vmatpush1.msra.mxu0 0.0
    %714 = vmatprep.subr.mxu0 0.0
    %715 = vmatpush1.msra.mxu0 0.0
    %716 = vmatprep.subr.mxu0 0.0
    %717 = vmatpush1.msra.mxu0 0.0
    %718 = vmatprep.subr.mxu0 0.0
    %719 = vmatpush1.msra.mxu0 0.0
    %720 = vmatprep.subr.mxu0 0.0
    %721 = vmatpush1.msra.mxu0 0.0
    %722 = vmatprep.subr.mxu0 0.0
    %723 = vmatpush1.msra.mxu0 0.0
    %724 = vmatprep.subr.mxu0 0.0
    %725 = vmatpush1.msra.mxu0 0.0
    %726 = vmatprep.mubr.f32.mxu0 0.0
    %727 = vmatmul.mubr.f32.gmra.mrb[0].mxu0 %v660
    %v728 = vpop.f32.mrb[0].mxu0
    %v729 = vadd.f32 0.0, %v728
    %v730 = vpop.f32.mrb[0].mxu0
    %731 = vdwg.mxu0
    %v733 = vrot.slane %v729, 6
    %v735 = vadd.f32 %v131, %v733
    %v736 = vxor.u32 %v735, 2147483648
    %v737 = vmul.f32 %v736, 1.442695
    %v738 = vpow.pop %v737
    %v739 = vadd.f32 %v738, 1.0
    %v740 = vrcp.pop %v739
    %v741 = vmul.f32 1.0, %v740
    %v742 = vtanh.pop %v735
    %v744 = vrot.slane %v650, 6
    %v746 = vmul.f32 %v741, %v744
    %748 = vrot.lane.b32.xlu0 %v742, 32
    %v749 = vpop.permute.xlu0 %748
    %v751 = vmul.f32 %v741, %v749
    %753 = vrot.lane.b32.xlu0 %v751, 32
    %v754 = vpop.permute.xlu0 %753
    %v756 = vadd.f32 %v746, %v754
    %v757 = vtanh.pop %v756
    %759 = vrot.lane.b32.xlu0 %v757, 32
    %v760 = vpop.permute.xlu0 %759
    %v762 = vmul.f32 %v741, %v760
    %v764 = vrot.slane %v762, 2
    %765 = vrot.lane.b32.xlu0 %v764, 64
    %v766 = vpop.permute.xlu0 %765
    %v767 = vsel %vm134, %v766, 0
    %769 = vmatprep.subr.mxu0 0.0
    %770 = vmatpush1.msra.mxu0 %v35
    %771 = vmatprep.subr.mxu0 0.0
    %772 = vmatpush1.msra.mxu0 %v36
    %773 = vmatprep.subr.mxu0 0.0
    %774 = vmatpush1.msra.mxu0 %v37
    %775 = vmatprep.subr.mxu0 0.0
    %776 = vmatpush1.msra.mxu0 %v38
    %777 = vmatprep.subr.mxu0 0.0
    %778 = vmatpush1.msra.mxu0 0.0
    %779 = vmatprep.subr.mxu0 0.0
    %780 = vmatpush1.msra.mxu0 0.0
    %781 = vmatprep.subr.mxu0 0.0
    %782 = vmatpush1.msra.mxu0 0.0
    %783 = vmatprep.subr.mxu0 0.0
    %784 = vmatpush1.msra.mxu0 0.0
    %785 = vmatprep.subr.mxu0 0.0
    %786 = vmatpush1.msra.mxu0 0.0
    %787 = vmatprep.subr.mxu0 0.0
    %788 = vmatpush1.msra.mxu0 0.0
    %789 = vmatprep.subr.mxu0 0.0
    %790 = vmatpush1.msra.mxu0 0.0
    %791 = vmatprep.subr.mxu0 0.0
    %792 = vmatpush1.msra.mxu0 0.0
    %793 = vmatprep.subr.mxu0 0.0
    %794 = vmatpush1.msra.mxu0 0.0
    %795 = vmatprep.subr.mxu0 0.0
    %796 = vmatpush1.msra.mxu0 0.0
    %797 = vmatprep.subr.mxu0 0.0
    %798 = vmatpush1.msra.mxu0 0.0
    %799 = vmatprep.subr.mxu0 0.0
    %800 = vmatpush1.msra.mxu0 0.0
    %801 = vmatprep.subr.mxu0 0.0
    %802 = vmatpush1.msra.mxu0 0.0
    %803 = vmatprep.subr.mxu0 0.0
    %804 = vmatpush1.msra.mxu0 0.0
    %805 = vmatprep.subr.mxu0 0.0
    %806 = vmatpush1.msra.mxu0 0.0
    %807 = vmatprep.subr.mxu0 0.0
    %808 = vmatpush1.msra.mxu0 0.0
    %809 = vmatprep.subr.mxu0 0.0
    %810 = vmatpush1.msra.mxu0 0.0
    %811 = vmatprep.subr.mxu0 0.0
    %812 = vmatpush1.msra.mxu0 0.0
    %813 = vmatprep.subr.mxu0 0.0
    %814 = vmatpush1.msra.mxu0 0.0
    %815 = vmatprep.subr.mxu0 0.0
    %816 = vmatpush1.msra.mxu0 0.0
    %817 = vmatprep.subr.mxu0 0.0
    %818 = vmatpush1.msra.mxu0 0.0
    %819 = vmatprep.subr.mxu0 0.0
    %820 = vmatpush1.msra.mxu0 0.0
    %821 = vmatprep.subr.mxu0 0.0
    %822 = vmatpush1.msra.mxu0 0.0
    %823 = vmatprep.subr.mxu0 0.0
    %824 = vmatpush1.msra.mxu0 0.0
    %825 = vmatprep.subr.mxu0 0.0
    %826 = vmatpush1.msra.mxu0 0.0
    %827 = vmatprep.subr.mxu0 0.0
    %828 = vmatpush1.msra.mxu0 0.0
    %829 = vmatprep.subr.mxu0 0.0
    %830 = vmatpush1.msra.mxu0 0.0
    %831 = vmatprep.subr.mxu0 0.0
    %832 = vmatpush1.msra.mxu0 0.0
    %833 = vmatprep.mubr.f32.mxu0 0.0
    %834 = vmatmul.mubr.f32.gmra.mrb[0].mxu0 %v767
    %v835 = vpop.f32.mrb[0].mxu0
    %v836 = vadd.f32 0.0, %v835
    %v837 = vpop.f32.mrb[0].mxu0
    %838 = vdwg.mxu0
    %v840 = vrot.slane %v836, 4
    %v842 = vadd.f32 %v131, %v840
    %v843 = vxor.u32 %v842, 2147483648
    %v844 = vmul.f32 %v843, 1.442695
    %v845 = vpow.pop %v844
    %v846 = vadd.f32 %v845, 1.0
    %v847 = vrcp.pop %v846
    %v848 = vmul.f32 1.0, %v847
    %v849 = vtanh.pop %v842
    %v851 = vrot.slane %v756, 6
    %v853 = vmul.f32 %v848, %v851
    %855 = vrot.lane.b32.xlu0 %v849, 32
    %v856 = vpop.permute.xlu0 %855
    %v858 = vmul.f32 %v848, %v856
    %860 = vrot.lane.b32.xlu0 %v858, 32
    %v861 = vpop.permute.xlu0 %860
    %v863 = vadd.f32 %v853, %v861
    %v864 = vtanh.pop %v863
    %866 = vrot.lane.b32.xlu0 %v864, 32
    %v867 = vpop.permute.xlu0 %866
    %v869 = vmul.f32 %v848, %v867
    %v871 = vrot.slane %v869, 4
    %872 = vrot.lane.b32.xlu0 %v871, 64
    %v873 = vpop.permute.xlu0 %872
    %v874 = vsel %vm134, %v873, 0
    %876 = vmatprep.subr.mxu0 0.0
    %877 = vmatpush1.msra.mxu0 %v35
    %878 = vmatprep.subr.mxu0 0.0
    %879 = vmatpush1.msra.mxu0 %v36
    %880 = vmatprep.subr.mxu0 0.0
    %881 = vmatpush1.msra.mxu0 %v37
    %882 = vmatprep.subr.mxu0 0.0
    %883 = vmatpush1.msra.mxu0 %v38
    %884 = vmatprep.subr.mxu0 0.0
    %885 = vmatpush1.msra.mxu0 0.0
    %886 = vmatprep.subr.mxu0 0.0
    %887 = vmatpush1.msra.mxu0 0.0
    %888 = vmatprep.subr.mxu0 0.0
    %889 = vmatpush1.msra.mxu0 0.0
    %890 = vmatprep.subr.mxu0 0.0
    %891 = vmatpush1.msra.mxu0 0.0
    %892 = vmatprep.subr.mxu0 0.0
    %893 = vmatpush1.msra.mxu0 0.0
    %894 = vmatprep.subr.mxu0 0.0
    %895 = vmatpush1.msra.mxu0 0.0
    %896 = vmatprep.subr.mxu0 0.0
    %897 = vmatpush1.msra.mxu0 0.0
    %898 = vmatprep.subr.mxu0 0.0
    %899 = vmatpush1.msra.mxu0 0.0
    %900 = vmatprep.subr.mxu0 0.0
    %901 = vmatpush1.msra.mxu0 0.0
    %902 = vmatprep.subr.mxu0 0.0
    %903 = vmatpush1.msra.mxu0 0.0
    %904 = vmatprep.subr.mxu0 0.0
    %905 = vmatpush1.msra.mxu0 0.0
    %906 = vmatprep.subr.mxu0 0.0
    %907 = vmatpush1.msra.mxu0 0.0
    %908 = vmatprep.subr.mxu0 0.0
    %909 = vmatpush1.msra.mxu0 0.0
    %910 = vmatprep.subr.mxu0 0.0
    %911 = vmatpush1.msra.mxu0 0.0
    %912 = vmatprep.subr.mxu0 0.0
    %913 = vmatpush1.msra.mxu0 0.0
    %914 = vmatprep.subr.mxu0 0.0
    %915 = vmatpush1.msra.mxu0 0.0
    %916 = vmatprep.subr.mxu0 0.0
    %917 = vmatpush1.msra.mxu0 0.0
    %918 = vmatprep.subr.mxu0 0.0
    %919 = vmatpush1.msra.mxu0 0.0
    %920 = vmatprep.subr.mxu0 0.0
    %921 = vmatpush1.msra.mxu0 0.0
    %922 = vmatprep.subr.mxu0 0.0
    %923 = vmatpush1.msra.mxu0 0.0
    %924 = vmatprep.subr.mxu0 0.0
    %925 = vmatpush1.msra.mxu0 0.0
    %926 = vmatprep.subr.mxu0 0.0
    %927 = vmatpush1.msra.mxu0 0.0
    %928 = vmatprep.subr.mxu0 0.0
    %929 = vmatpush1.msra.mxu0 0.0
    %930 = vmatprep.subr.mxu0 0.0
    %931 = vmatpush1.msra.mxu0 0.0
    %932 = vmatprep.subr.mxu0 0.0
    %933 = vmatpush1.msra.mxu0 0.0
    %934 = vmatprep.subr.mxu0 0.0
    %935 = vmatpush1.msra.mxu0 0.0
    %936 = vmatprep.subr.mxu0 0.0
    %937 = vmatpush1.msra.mxu0 0.0
    %938 = vmatprep.subr.mxu0 0.0
    %939 = vmatpush1.msra.mxu0 0.0
    %940 = vmatprep.mubr.f32.mxu0 0.0
    %941 = vmatmul.mubr.f32.gmra.mrb[0].mxu0 %v874
    %v942 = vpop.f32.mrb[0].mxu0
    %v943 = vadd.f32 0.0, %v942
    %v944 = vpop.f32.mrb[0].mxu0
    %945 = vdwg.mxu0
    %v947 = vrot.slane %v943, 2
    %v949 = vadd.f32 %v131, %v947
    %v950 = vxor.u32 %v949, 2147483648
    %v951 = vmul.f32 %v950, 1.442695
    %v952 = vpow.pop %v951
    %v953 = vadd.f32 %v952, 1.0
    %v954 = vrcp.pop %v953
    %v955 = vmul.f32 1.0, %v954
    %v956 = vtanh.pop %v949
    %v958 = vrot.slane %v863, 6
    %v960 = vmul.f32 %v955, %v958
    %962 = vrot.lane.b32.xlu0 %v956, 32
    %v963 = vpop.permute.xlu0 %962
    %v965 = vmul.f32 %v955, %v963
    %967 = vrot.lane.b32.xlu0 %v965, 32
    %v968 = vpop.permute.xlu0 %967
    %v970 = vadd.f32 %v960, %v968
    %v971 = vtanh.pop %v970
    %973 = vrot.lane.b32.xlu0 %v971, 32
    %v974 = vpop.permute.xlu0 %973
    %v976 = vmul.f32 %v955, %v974
    %vm977 = vcmask 1041408
    %v978 = vsel %vm977, %v232, %v338
    %vm979 = vcmask 1043456
    %v980 = vsel %vm979, %v978, %v445
    %vm981 = vcmask 1045504
    %v982 = vsel %vm981, %v980, %v552
    %v983 = vsel %vm977, %v656, %v762
    %v984 = vsel %vm979, %v983, %v869
    %v985 = vsel %vm981, %v984, %v976
    %v986 = vld [vmem:[%s4] sm:$0xff]
    %v987 = vld [vmem:[%s4 + $0x8] sm:$0xff]
    %v988 = vld [vmem:[%s4 + $0x10] sm:$0xff]
    %v989 = vld [vmem:[%s4 + $0x18] sm:$0xff]
    %v990 = vld [vmem:[%s6] sm:$0x1]
    %v992 = vlaneseq
    %v993 = vshrl.u32 %v992, 7
    %v994 = vsub.s32 0, %v993
    %v995 = vrot.slane %v990, %v994
    %999 = vrot.lane.b32.xlu0 %v982, 64
    %v1000 = vpop.permute.xlu0 %999
    %1001 = vrot.lane.b32.xlu0 %v985, 64
    %v1002 = vpop.permute.xlu0 %1001
    %v1003 = vsel %vm134, %v1000, 0
    %v1005 = vsel %vm134, %v1002, 0
    %1007 = vmatprep.subr.mxu0 0.0
    %1008 = vmatpush1.msra.mxu0 %v986
    %1009 = vmatprep.subr.mxu0 0.0
    %1010 = vmatpush1.msra.mxu0 %v987
    %1011 = vmatprep.subr.mxu0 0.0
    %1012 = vmatpush1.msra.mxu0 %v988
    %1013 = vmatprep.subr.mxu0 0.0
    %1014 = vmatpush1.msra.mxu0 %v989
    %1015 = vmatprep.subr.mxu0 0.0
    %1016 = vmatpush1.msra.mxu0 0.0
    %1017 = vmatprep.subr.mxu0 0.0
    %1018 = vmatpush1.msra.mxu0 0.0
    %1019 = vmatprep.subr.mxu0 0.0
    %1020 = vmatpush1.msra.mxu0 0.0
    %1021 = vmatprep.subr.mxu0 0.0
    %1022 = vmatpush1.msra.mxu0 0.0
    %1023 = vmatprep.subr.mxu0 0.0
    %1024 = vmatpush1.msra.mxu0 0.0
    %1025 = vmatprep.subr.mxu0 0.0
    %1026 = vmatpush1.msra.mxu0 0.0
    %1027 = vmatprep.subr.mxu0 0.0
    %1028 = vmatpush1.msra.mxu0 0.0
    %1029 = vmatprep.subr.mxu0 0.0
    %1030 = vmatpush1.msra.mxu0 0.0
    %1031 = vmatprep.subr.mxu0 0.0
    %1032 = vmatpush1.msra.mxu0 0.0
    %1033 = vmatprep.subr.mxu0 0.0
    %1034 = vmatpush1.msra.mxu0 0.0
    %1035 = vmatprep.subr.mxu0 0.0
    %1036 = vmatpush1.msra.mxu0 0.0
    %1037 = vmatprep.subr.mxu0 0.0
    %1038 = vmatpush1.msra.mxu0 0.0
    %1039 = vmatprep.subr.mxu0 0.0
    %1040 = vmatpush1.msra.mxu0 0.0
    %1041 = vmatprep.subr.mxu0 0.0
    %1042 = vmatpush1.msra.mxu0 0.0
    %1043 = vmatprep.subr.mxu0 0.0
    %1044 = vmatpush1.msra.mxu0 0.0
    %1045 = vmatprep.subr.mxu0 0.0
    %1046 = vmatpush1.msra.mxu0 0.0
    %1047 = vmatprep.subr.mxu0 0.0
    %1048 = vmatpush1.msra.mxu0 0.0
    %1049 = vmatprep.subr.mxu0 0.0
    %1050 = vmatpush1.msra.mxu0 0.0
    %1051 = vmatprep.subr.mxu0 0.0
    %1052 = vmatpush1.msra.mxu0 0.0
    %1053 = vmatprep.subr.mxu0 0.0
    %1054 = vmatpush1.msra.mxu0 0.0
    %1055 = vmatprep.subr.mxu0 0.0
    %1056 = vmatpush1.msra.mxu0 0.0
    %1057 = vmatprep.subr.mxu0 0.0
    %1058 = vmatpush1.msra.mxu0 0.0
    %1059 = vmatprep.subr.mxu0 0.0
    %1060 = vmatpush1.msra.mxu0 0.0
    %1061 = vmatprep.subr.mxu0 0.0
    %1062 = vmatpush1.msra.mxu0 0.0
    %1063 = vmatprep.subr.mxu0 0.0
    %1064 = vmatpush1.msra.mxu0 0.0
    %1065 = vmatprep.subr.mxu0 0.0
    %1066 = vmatpush1.msra.mxu0 0.0
    %1067 = vmatprep.subr.mxu0 0.0
    %1068 = vmatpush1.msra.mxu0 0.0
    %1069 = vmatprep.subr.mxu0 0.0
    %1070 = vmatpush1.msra.mxu0 0.0
    %1071 = vmatprep.mubr.f32.mxu0 0.0
    %1072 = vmatmul.mubr.f32.gmra.mrb[0].mxu0 %v1003
    %v1073 = vpop.f32.mrb[0].mxu0
    %v1074 = vadd.f32 %v995, %v1073
    %v1075 = vpop.f32.mrb[0].mxu0
    %1076 = vmatprep.mubr.f32.mxu0 0.0
    %1077 = vmatmul.mubr.f32.gmra.mrb[0].mxu0 %v1005
    %v1078 = vpop.f32.mrb[0].mxu0
    %v1079 = vadd.f32 %v995, %v1078
    %v1080 = vpop.f32.mrb[0].mxu0
    %1081 = vdwg.mxu0
    %1082 = vmatprep.subr.mxu0 0.0
    %1083 = vmatpush1.msra.mxu0 %v39
    %1084 = vmatprep.subr.mxu0 0.0
    %1085 = vmatpush1.msra.mxu0 %v40
    %1086 = vmatprep.subr.mxu0 0.0
    %1087 = vmatpush1.msra.mxu0 %v41
    %1088 = vmatprep.subr.mxu0 0.0
    %1089 = vmatpush1.msra.mxu0 %v42
    %1090 = vmatprep.subr.mxu0 0.0
    %1091 = vmatpush1.msra.mxu0 0.0
    %1092 = vmatprep.subr.mxu0 0.0
    %1093 = vmatpush1.msra.mxu0 0.0
    %1094 = vmatprep.subr.mxu0 0.0
    %1095 = vmatpush1.msra.mxu0 0.0
    %1096 = vmatprep.subr.mxu0 0.0
    %1097 = vmatpush1.msra.mxu0 0.0
    %1098 = vmatprep.subr.mxu0 0.0
    %1099 = vmatpush1.msra.mxu0 0.0
    %1100 = vmatprep.subr.mxu0 0.0
    %1101 = vmatpush1.msra.mxu0 0.0
    %1102 = vmatprep.subr.mxu0 0.0
    %1103 = vmatpush1.msra.mxu0 0.0
    %1104 = vmatprep.subr.mxu0 0.0
    %1105 = vmatpush1.msra.mxu0 0.0
    %1106 = vmatprep.subr.mxu0 0.0
    %1107 = vmatpush1.msra.mxu0 0.0
    %1108 = vmatprep.subr.mxu0 0.0
    %1109 = vmatpush1.msra.mxu0 0.0
    %1110 = vmatprep.subr.mxu0 0.0
    %1111 = vmatpush1.msra.mxu0 0.0
    %1112 = vmatprep.subr.mxu0 0.0
    %1113 = vmatpush1.msra.mxu0 0.0
    %1114 = vmatprep.subr.mxu0 0.0
    %1115 = vmatpush1.msra.mxu0 0.0
    %1116 = vmatprep.subr.mxu0 0.0
    %1117 = vmatpush1.msra.mxu0 0.0
    %1118 = vmatprep.subr.mxu0 0.0
    %1119 = vmatpush1.msra.mxu0 0.0
    %1120 = vmatprep.subr.mxu0 0.0
    %1121 = vmatpush1.msra.mxu0 0.0
    %1122 = vmatprep.subr.mxu0 0.0
    %1123 = vmatpush1.msra.mxu0 0.0
    %1124 = vmatprep.subr.mxu0 0.0
    %1125 = vmatpush1.msra.mxu0 0.0
    %1126 = vmatprep.subr.mxu0 0.0
    %1127 = vmatpush1.msra.mxu0 0.0
    %1128 = vmatprep.subr.mxu0 0.0
    %1129 = vmatpush1.msra.mxu0 0.0
    %1130 = vmatprep.subr.mxu0 0.0
    %1131 = vmatpush1.msra.mxu0 0.0
    %1132 = vmatprep.subr.mxu0 0.0
    %1133 = vmatpush1.msra.mxu0 0.0
    %1134 = vmatprep.subr.mxu0 0.0
    %1135 = vmatpush1.msra.mxu0 0.0
    %1136 = vmatprep.subr.mxu0 0.0
    %1137 = vmatpush1.msra.mxu0 0.0
    %1138 = vmatprep.subr.mxu0 0.0
    %1139 = vmatpush1.msra.mxu0 0.0
    %1140 = vmatprep.subr.mxu0 0.0
    %1141 = vmatpush1.msra.mxu0 0.0
    %1142 = vmatprep.subr.mxu0 0.0
    %1143 = vmatpush1.msra.mxu0 0.0
    %1144 = vmatprep.subr.mxu0 0.0
    %1145 = vmatpush1.msra.mxu0 0.0
    %1146 = vmatprep.mubr.f32.mxu0 0.0
    %1147 = vmatmul.mubr.f32.gmra.mrb[0].mxu0 %v136
    %v1148 = vpop.f32.mrb[0].mxu0
    %v1149 = vadd.f32 0.0, %v1148
    %v1150 = vpop.f32.mrb[0].mxu0
    %1151 = vdwg.mxu0
    %v1152 = vadd.f32 %v1074, %v1149
    %v1153 = vxor.u32 %v1152, 2147483648
    %v1154 = vmul.f32 %v1153, 1.442695
    %v1155 = vpow.pop %v1154
    %v1156 = vadd.f32 %v1155, 1.0
    %v1157 = vrcp.pop %v1156
    %v1158 = vmul.f32 1.0, %v1157
    %v1159 = vtanh.pop %v1152
    %v1160 = vmul.f32 %v1158, 0.0
    %1162 = vrot.lane.b32.xlu0 %v1159, 32
    %v1163 = vpop.permute.xlu0 %1162
    %v1165 = vmul.f32 %v1158, %v1163
    %1167 = vrot.lane.b32.xlu0 %v1165, 32
    %v1168 = vpop.permute.xlu0 %1167
    %v1170 = vadd.f32 %v1160, %v1168
    %v1171 = vtanh.pop %v1170
    %1173 = vrot.lane.b32.xlu0 %v1171, 32
    %v1174 = vpop.permute.xlu0 %1173
    %v1176 = vmul.f32 %v1158, %v1174
    %1178 = vrot.lane.b32.xlu0 %v1176, 64
    %v1179 = vpop.permute.xlu0 %1178
    %v1180 = vsel %vm134, %v1179, 0
    %1182 = vmatprep.subr.mxu0 0.0
    %1183 = vmatpush1.msra.mxu0 %v39
    %1184 = vmatprep.subr.mxu0 0.0
    %1185 = vmatpush1.msra.mxu0 %v40
    %1186 = vmatprep.subr.mxu0 0.0
    %1187 = vmatpush1.msra.mxu0 %v41
    %1188 = vmatprep.subr.mxu0 0.0
    %1189 = vmatpush1.msra.mxu0 %v42
    %1190 = vmatprep.subr.mxu0 0.0
    %1191 = vmatpush1.msra.mxu0 0.0
    %1192 = vmatprep.subr.mxu0 0.0
    %1193 = vmatpush1.msra.mxu0 0.0
    %1194 = vmatprep.subr.mxu0 0.0
    %1195 = vmatpush1.msra.mxu0 0.0
    %1196 = vmatprep.subr.mxu0 0.0
    %1197 = vmatpush1.msra.mxu0 0.0
    %1198 = vmatprep.subr.mxu0 0.0
    %1199 = vmatpush1.msra.mxu0 0.0
    %1200 = vmatprep.subr.mxu0 0.0
    %1201 = vmatpush1.msra.mxu0 0.0
    %1202 = vmatprep.subr.mxu0 0.0
    %1203 = vmatpush1.msra.mxu0 0.0
    %1204 = vmatprep.subr.mxu0 0.0
    %1205 = vmatpush1.msra.mxu0 0.0
    %1206 = vmatprep.subr.mxu0 0.0
    %1207 = vmatpush1.msra.mxu0 0.0
    %1208 = vmatprep.subr.mxu0 0.0
    %1209 = vmatpush1.msra.mxu0 0.0
    %1210 = vmatprep.subr.mxu0 0.0
    %1211 = vmatpush1.msra.mxu0 0.0
    %1212 = vmatprep.subr.mxu0 0.0
    %1213 = vmatpush1.msra.mxu0 0.0
    %1214 = vmatprep.subr.mxu0 0.0
    %1215 = vmatpush1.msra.mxu0 0.0
    %1216 = vmatprep.subr.mxu0 0.0
    %1217 = vmatpush1.msra.mxu0 0.0
    %1218 = vmatprep.subr.mxu0 0.0
    %1219 = vmatpush1.msra.mxu0 0.0
    %1220 = vmatprep.subr.mxu0 0.0
    %1221 = vmatpush1.msra.mxu0 0.0
    %1222 = vmatprep.subr.mxu0 0.0
    %1223 = vmatpush1.msra.mxu0 0.0
    %1224 = vmatprep.subr.mxu0 0.0
    %1225 = vmatpush1.msra.mxu0 0.0
    %1226 = vmatprep.subr.mxu0 0.0
    %1227 = vmatpush1.msra.mxu0 0.0
    %1228 = vmatprep.subr.mxu0 0.0
    %1229 = vmatpush1.msra.mxu0 0.0
    %1230 = vmatprep.subr.mxu0 0.0
    %1231 = vmatpush1.msra.mxu0 0.0
    %1232 = vmatprep.subr.mxu0 0.0
    %1233 = vmatpush1.msra.mxu0 0.0
    %1234 = vmatprep.subr.mxu0 0.0
    %1235 = vmatpush1.msra.mxu0 0.0
    %1236 = vmatprep.subr.mxu0 0.0
    %1237 = vmatpush1.msra.mxu0 0.0
    %1238 = vmatprep.subr.mxu0 0.0
    %1239 = vmatpush1.msra.mxu0 0.0
    %1240 = vmatprep.subr.mxu0 0.0
    %1241 = vmatpush1.msra.mxu0 0.0
    %1242 = vmatprep.subr.mxu0 0.0
    %1243 = vmatpush1.msra.mxu0 0.0
    %1244 = vmatprep.subr.mxu0 0.0
    %1245 = vmatpush1.msra.mxu0 0.0
    %1246 = vmatprep.mubr.f32.mxu0 0.0
    %1247 = vmatmul.mubr.f32.gmra.mrb[0].mxu0 %v1180
    %v1248 = vpop.f32.mrb[0].mxu0
    %v1249 = vadd.f32 0.0, %v1248
    %v1250 = vpop.f32.mrb[0].mxu0
    %1251 = vdwg.mxu0
    %v1253 = vrot.slane %v1249, 6
    %v1255 = vadd.f32 %v1074, %v1253
    %v1256 = vxor.u32 %v1255, 2147483648
    %v1257 = vmul.f32 %v1256, 1.442695
    %v1258 = vpow.pop %v1257
    %v1259 = vadd.f32 %v1258, 1.0
    %v1260 = vrcp.pop %v1259
    %v1261 = vmul.f32 1.0, %v1260
    %v1262 = vtanh.pop %v1255
    %v1264 = vrot.slane %v1170, 6
    %v1266 = vmul.f32 %v1261, %v1264
    %1268 = vrot.lane.b32.xlu0 %v1262, 32
    %v1269 = vpop.permute.xlu0 %1268
    %v1271 = vmul.f32 %v1261, %v1269
    %1273 = vrot.lane.b32.xlu0 %v1271, 32
    %v1274 = vpop.permute.xlu0 %1273
    %v1276 = vadd.f32 %v1266, %v1274
    %v1277 = vtanh.pop %v1276
    %1279 = vrot.lane.b32.xlu0 %v1277, 32
    %v1280 = vpop.permute.xlu0 %1279
    %v1282 = vmul.f32 %v1261, %v1280
    %v1284 = vrot.slane %v1282, 2
    %1285 = vrot.lane.b32.xlu0 %v1284, 64
    %v1286 = vpop.permute.xlu0 %1285
    %v1287 = vsel %vm134, %v1286, 0
    %1289 = vmatprep.subr.mxu0 0.0
    %1290 = vmatpush1.msra.mxu0 %v39
    %1291 = vmatprep.subr.mxu0 0.0
    %1292 = vmatpush1.msra.mxu0 %v40
    %1293 = vmatprep.subr.mxu0 0.0
    %1294 = vmatpush1.msra.mxu0 %v41
    %1295 = vmatprep.subr.mxu0 0.0
    %1296 = vmatpush1.msra.mxu0 %v42
    %1297 = vmatprep.subr.mxu0 0.0
    %1298 = vmatpush1.msra.mxu0 0.0
    %1299 = vmatprep.subr.mxu0 0.0
    %1300 = vmatpush1.msra.mxu0 0.0
    %1301 = vmatprep.subr.mxu0 0.0
    %1302 = vmatpush1.msra.mxu0 0.0
    %1303 = vmatprep.subr.mxu0 0.0
    %1304 = vmatpush1.msra.mxu0 0.0
    %1305 = vmatprep.subr.mxu0 0.0
    %1306 = vmatpush1.msra.mxu0 0.0
    %1307 = vmatprep.subr.mxu0 0.0
    %1308 = vmatpush1.msra.mxu0 0.0
    %1309 = vmatprep.subr.mxu0 0.0
    %1310 = vmatpush1.msra.mxu0 0.0
    %1311 = vmatprep.subr.mxu0 0.0
    %1312 = vmatpush1.msra.mxu0 0.0
    %1313 = vmatprep.subr.mxu0 0.0
    %1314 = vmatpush1.msra.mxu0 0.0
    %1315 = vmatprep.subr.mxu0 0.0
    %1316 = vmatpush1.msra.mxu0 0.0
    %1317 = vmatprep.subr.mxu0 0.0
    %1318 = vmatpush1.msra.mxu0 0.0
    %1319 = vmatprep.subr.mxu0 0.0
    %1320 = vmatpush1.msra.mxu0 0.0
    %1321 = vmatprep.subr.mxu0 0.0
    %1322 = vmatpush1.msra.mxu0 0.0
    %1323 = vmatprep.subr.mxu0 0.0
    %1324 = vmatpush1.msra.mxu0 0.0
    %1325 = vmatprep.subr.mxu0 0.0
    %1326 = vmatpush1.msra.mxu0 0.0
    %1327 = vmatprep.subr.mxu0 0.0
    %1328 = vmatpush1.msra.mxu0 0.0
    %1329 = vmatprep.subr.mxu0 0.0
    %1330 = vmatpush1.msra.mxu0 0.0
    %1331 = vmatprep.subr.mxu0 0.0
    %1332 = vmatpush1.msra.mxu0 0.0
    %1333 = vmatprep.subr.mxu0 0.0
    %1334 = vmatpush1.msra.mxu0 0.0
    %1335 = vmatprep.subr.mxu0 0.0
    %1336 = vmatpush1.msra.mxu0 0.0
    %1337 = vmatprep.subr.mxu0 0.0
    %1338 = vmatpush1.msra.mxu0 0.0
    %1339 = vmatprep.subr.mxu0 0.0
    %1340 = vmatpush1.msra.mxu0 0.0
    %1341 = vmatprep.subr.mxu0 0.0
    %1342 = vmatpush1.msra.mxu0 0.0
    %1343 = vmatprep.subr.mxu0 0.0
    %1344 = vmatpush1.msra.mxu0 0.0
    %1345 = vmatprep.subr.mxu0 0.0
    %1346 = vmatpush1.msra.mxu0 0.0
    %1347 = vmatprep.subr.mxu0 0.0
    %1348 = vmatpush1.msra.mxu0 0.0
    %1349 = vmatprep.subr.mxu0 0.0
    %1350 = vmatpush1.msra.mxu0 0.0
    %1351 = vmatprep.subr.mxu0 0.0
    %1352 = vmatpush1.msra.mxu0 0.0
    %1353 = vmatprep.mubr.f32.mxu0 0.0
    %1354 = vmatmul.mubr.f32.gmra.mrb[0].mxu0 %v1287
    %v1355 = vpop.f32.mrb[0].mxu0
    %v1356 = vadd.f32 0.0, %v1355
    %v1357 = vpop.f32.mrb[0].mxu0
    %1358 = vdwg.mxu0
    %v1360 = vrot.slane %v1356, 4
    %v1362 = vadd.f32 %v1074, %v1360
    %v1363 = vxor.u32 %v1362, 2147483648
    %v1364 = vmul.f32 %v1363, 1.442695
    %v1365 = vpow.pop %v1364
    %v1366 = vadd.f32 %v1365, 1.0
    %v1367 = vrcp.pop %v1366
    %v1368 = vmul.f32 1.0, %v1367
    %v1369 = vtanh.pop %v1362
    %v1371 = vrot.slane %v1276, 6
    %v1373 = vmul.f32 %v1368, %v1371
    %1375 = vrot.lane.b32.xlu0 %v1369, 32
    %v1376 = vpop.permute.xlu0 %1375
    %v1378 = vmul.f32 %v1368, %v1376
    %1380 = vrot.lane.b32.xlu0 %v1378, 32
    %v1381 = vpop.permute.xlu0 %1380
    %v1383 = vadd.f32 %v1373, %v1381
    %v1384 = vtanh.pop %v1383
    %1386 = vrot.lane.b32.xlu0 %v1384, 32
    %v1387 = vpop.permute.xlu0 %1386
    %v1389 = vmul.f32 %v1368, %v1387
    %v1391 = vrot.slane %v1389, 4
    %1392 = vrot.lane.b32.xlu0 %v1391, 64
    %v1393 = vpop.permute.xlu0 %1392
    %v1394 = vsel %vm134, %v1393, 0
    %1396 = vmatprep.subr.mxu0 0.0
    %1397 = vmatpush1.msra.mxu0 %v39
    %1398 = vmatprep.subr.mxu0 0.0
    %1399 = vmatpush1.msra.mxu0 %v40
    %1400 = vmatprep.subr.mxu0 0.0
    %1401 = vmatpush1.msra.mxu0 %v41
    %1402 = vmatprep.subr.mxu0 0.0
    %1403 = vmatpush1.msra.mxu0 %v42
    %1404 = vmatprep.subr.mxu0 0.0
    %1405 = vmatpush1.msra.mxu0 0.0
    %1406 = vmatprep.subr.mxu0 0.0
    %1407 = vmatpush1.msra.mxu0 0.0
    %1408 = vmatprep.subr.mxu0 0.0
    %1409 = vmatpush1.msra.mxu0 0.0
    %1410 = vmatprep.subr.mxu0 0.0
    %1411 = vmatpush1.msra.mxu0 0.0
    %1412 = vmatprep.subr.mxu0 0.0
    %1413 = vmatpush1.msra.mxu0 0.0
    %1414 = vmatprep.subr.mxu0 0.0
    %1415 = vmatpush1.msra.mxu0 0.0
    %1416 = vmatprep.subr.mxu0 0.0
    %1417 = vmatpush1.msra.mxu0 0.0
    %1418 = vmatprep.subr.mxu0 0.0
    %1419 = vmatpush1.msra.mxu0 0.0
    %1420 = vmatprep.subr.mxu0 0.0
    %1421 = vmatpush1.msra.mxu0 0.0
    %1422 = vmatprep.subr.mxu0 0.0
    %1423 = vmatpush1.msra.mxu0 0.0
    %1424 = vmatprep.subr.mxu0 0.0
    %1425 = vmatpush1.msra.mxu0 0.0
    %1426 = vmatprep.subr.mxu0 0.0
    %1427 = vmatpush1.msra.mxu0 0.0
    %1428 = vmatprep.subr.mxu0 0.0
    %1429 = vmatpush1.msra.mxu0 0.0
    %1430 = vmatprep.subr.mxu0 0.0
    %1431 = vmatpush1.msra.mxu0 0.0
    %1432 = vmatprep.subr.mxu0 0.0
    %1433 = vmatpush1.msra.mxu0 0.0
    %1434 = vmatprep.subr.mxu0 0.0
    %1435 = vmatpush1.msra.mxu0 0.0
    %1436 = vmatprep.subr.mxu0 0.0
    %1437 = vmatpush1.msra.mxu0 0.0
    %1438 = vmatprep.subr.mxu0 0.0
    %1439 = vmatpush1.msra.mxu0 0.0
    %1440 = vmatprep.subr.mxu0 0.0
    %1441 = vmatpush1.msra.mxu0 0.0
    %1442 = vmatprep.subr.mxu0 0.0
    %1443 = vmatpush1.msra.mxu0 0.0
    %1444 = vmatprep.subr.mxu0 0.0
    %1445 = vmatpush1.msra.mxu0 0.0
    %1446 = vmatprep.subr.mxu0 0.0
    %1447 = vmatpush1.msra.mxu0 0.0
    %1448 = vmatprep.subr.mxu0 0.0
    %1449 = vmatpush1.msra.mxu0 0.0
    %1450 = vmatprep.subr.mxu0 0.0
    %1451 = vmatpush1.msra.mxu0 0.0
    %1452 = vmatprep.subr.mxu0 0.0
    %1453 = vmatpush1.msra.mxu0 0.0
    %1454 = vmatprep.subr.mxu0 0.0
    %1455 = vmatpush1.msra.mxu0 0.0
    %1456 = vmatprep.subr.mxu0 0.0
    %1457 = vmatpush1.msra.mxu0 0.0
    %1458 = vmatprep.subr.mxu0 0.0
    %1459 = vmatpush1.msra.mxu0 0.0
    %1460 = vmatprep.mubr.f32.mxu0 0.0
    %1461 = vmatmul.mubr.f32.gmra.mrb[0].mxu0 %v1394
    %v1462 = vpop.f32.mrb[0].mxu0
    %v1463 = vadd.f32 0.0, %v1462
    %v1464 = vpop.f32.mrb[0].mxu0
    %1465 = vdwg.mxu0
    %v1467 = vrot.slane %v1463, 2
    %v1469 = vadd.f32 %v1074, %v1467
    %v1470 = vxor.u32 %v1469, 2147483648
    %v1471 = vmul.f32 %v1470, 1.442695
    %v1472 = vpow.pop %v1471
    %v1473 = vadd.f32 %v1472, 1.0
    %v1474 = vrcp.pop %v1473
    %v1475 = vmul.f32 1.0, %v1474
    %v1476 = vtanh.pop %v1469
    %v1478 = vrot.slane %v1383, 6
    %v1480 = vmul.f32 %v1475, %v1478
    %1482 = vrot.lane.b32.xlu0 %v1476, 32
    %v1483 = vpop.permute.xlu0 %1482
    %v1485 = vmul.f32 %v1475, %v1483
    %1487 = vrot.lane.b32.xlu0 %v1485, 32
    %v1488 = vpop.permute.xlu0 %1487
    %v1490 = vadd.f32 %v1480, %v1488
    %v1491 = vtanh.pop %v1490
    %1493 = vrot.lane.b32.xlu0 %v1491, 32
    %v1494 = vpop.permute.xlu0 %1493
    %v1496 = vmul.f32 %v1475, %v1494
    %v1498 = vrot.slane %v1496, 6
    %1499 = vrot.lane.b32.xlu0 %v1498, 64
    %v1500 = vpop.permute.xlu0 %1499
    %v1501 = vsel %vm134, %v1500, 0
    %1503 = vmatprep.subr.mxu0 0.0
    %1504 = vmatpush1.msra.mxu0 %v39
    %1505 = vmatprep.subr.mxu0 0.0
    %1506 = vmatpush1.msra.mxu0 %v40
    %1507 = vmatprep.subr.mxu0 0.0
    %1508 = vmatpush1.msra.mxu0 %v41
    %1509 = vmatprep.subr.mxu0 0.0
    %1510 = vmatpush1.msra.mxu0 %v42
    %1511 = vmatprep.subr.mxu0 0.0
    %1512 = vmatpush1.msra.mxu0 0.0
    %1513 = vmatprep.subr.mxu0 0.0
    %1514 = vmatpush1.msra.mxu0 0.0
    %1515 = vmatprep.subr.mxu0 0.0
    %1516 = vmatpush1.msra.mxu0 0.0
    %1517 = vmatprep.subr.mxu0 0.0
    %1518 = vmatpush1.msra.mxu0 0.0
    %1519 = vmatprep.subr.mxu0 0.0
    %1520 = vmatpush1.msra.mxu0 0.0
    %1521 = vmatprep.subr.mxu0 0.0
    %1522 = vmatpush1.msra.mxu0 0.0
    %1523 = vmatprep.subr.mxu0 0.0
    %1524 = vmatpush1.msra.mxu0 0.0
    %1525 = vmatprep.subr.mxu0 0.0
    %1526 = vmatpush1.msra.mxu0 0.0
    %1527 = vmatprep.subr.mxu0 0.0
    %1528 = vmatpush1.msra.mxu0 0.0
    %1529 = vmatprep.subr.mxu0 0.0
    %1530 = vmatpush1.msra.mxu0 0.0
    %1531 = vmatprep.subr.mxu0 0.0
    %1532 = vmatpush1.msra.mxu0 0.0
    %1533 = vmatprep.subr.mxu0 0.0
    %1534 = vmatpush1.msra.mxu0 0.0
    %1535 = vmatprep.subr.mxu0 0.0
    %1536 = vmatpush1.msra.mxu0 0.0
    %1537 = vmatprep.subr.mxu0 0.0
    %1538 = vmatpush1.msra.mxu0 0.0
    %1539 = vmatprep.subr.mxu0 0.0
    %1540 = vmatpush1.msra.mxu0 0.0
    %1541 = vmatprep.subr.mxu0 0.0
    %1542 = vmatpush1.msra.mxu0 0.0
    %1543 = vmatprep.subr.mxu0 0.0
    %1544 = vmatpush1.msra.mxu0 0.0
    %1545 = vmatprep.subr.mxu0 0.0
    %1546 = vmatpush1.msra.mxu0 0.0
    %1547 = vmatprep.subr.mxu0 0.0
    %1548 = vmatpush1.msra.mxu0 0.0
    %1549 = vmatprep.subr.mxu0 0.0
    %1550 = vmatpush1.msra.mxu0 0.0
    %1551 = vmatprep.subr.mxu0 0.0
    %1552 = vmatpush1.msra.mxu0 0.0
    %1553 = vmatprep.subr.mxu0 0.0
    %1554 = vmatpush1.msra.mxu0 0.0
    %1555 = vmatprep.subr.mxu0 0.0
    %1556 = vmatpush1.msra.mxu0 0.0
    %1557 = vmatprep.subr.mxu0 0.0
    %1558 = vmatpush1.msra.mxu0 0.0
    %1559 = vmatprep.subr.mxu0 0.0
    %1560 = vmatpush1.msra.mxu0 0.0
    %1561 = vmatprep.subr.mxu0 0.0
    %1562 = vmatpush1.msra.mxu0 0.0
    %1563 = vmatprep.subr.mxu0 0.0
    %1564 = vmatpush1.msra.mxu0 0.0
    %1565 = vmatprep.subr.mxu0 0.0
    %1566 = vmatpush1.msra.mxu0 0.0
    %1567 = vmatprep.mubr.f32.mxu0 0.0
    %1568 = vmatmul.mubr.f32.gmra.mrb[0].mxu0 %v1501
    %v1569 = vpop.f32.mrb[0].mxu0
    %v1570 = vadd.f32 0.0, %v1569
    %v1571 = vpop.f32.mrb[0].mxu0
    %1572 = vdwg.mxu0
    %v1573 = vadd.f32 %v1079, %v1570
    %v1574 = vxor.u32 %v1573, 2147483648
    %v1575 = vmul.f32 %v1574, 1.442695
    %v1576 = vpow.pop %v1575
    %v1577 = vadd.f32 %v1576, 1.0
    %v1578 = vrcp.pop %v1577
    %v1579 = vmul.f32 1.0, %v1578
    %v1580 = vtanh.pop %v1573
    %v1582 = vrot.slane %v1490, 6
    %v1584 = vmul.f32 %v1579, %v1582
    %1586 = vrot.lane.b32.xlu0 %v1580, 32
    %v1587 = vpop.permute.xlu0 %1586
    %v1589 = vmul.f32 %v1579, %v1587
    %1591 = vrot.lane.b32.xlu0 %v1589, 32
    %v1592 = vpop.permute.xlu0 %1591
    %v1594 = vadd.f32 %v1584, %v1592
    %v1595 = vtanh.pop %v1594
    %1597 = vrot.lane.b32.xlu0 %v1595, 32
    %v1598 = vpop.permute.xlu0 %1597
    %v1600 = vmul.f32 %v1579, %v1598
    %1602 = vrot.lane.b32.xlu0 %v1600, 64
    %v1603 = vpop.permute.xlu0 %1602
    %v1604 = vsel %vm134, %v1603, 0
    %1606 = vmatprep.subr.mxu0 0.0
    %1607 = vmatpush1.msra.mxu0 %v39
    %1608 = vmatprep.subr.mxu0 0.0
    %1609 = vmatpush1.msra.mxu0 %v40
    %1610 = vmatprep.subr.mxu0 0.0
    %1611 = vmatpush1.msra.mxu0 %v41
    %1612 = vmatprep.subr.mxu0 0.0
    %1613 = vmatpush1.msra.mxu0 %v42
    %1614 = vmatprep.subr.mxu0 0.0
    %1615 = vmatpush1.msra.mxu0 0.0
    %1616 = vmatprep.subr.mxu0 0.0
    %1617 = vmatpush1.msra.mxu0 0.0
    %1618 = vmatprep.subr.mxu0 0.0
    %1619 = vmatpush1.msra.mxu0 0.0
    %1620 = vmatprep.subr.mxu0 0.0
    %1621 = vmatpush1.msra.mxu0 0.0
    %1622 = vmatprep.subr.mxu0 0.0
    %1623 = vmatpush1.msra.mxu0 0.0
    %1624 = vmatprep.subr.mxu0 0.0
    %1625 = vmatpush1.msra.mxu0 0.0
    %1626 = vmatprep.subr.mxu0 0.0
    %1627 = vmatpush1.msra.mxu0 0.0
    %1628 = vmatprep.subr.mxu0 0.0
    %1629 = vmatpush1.msra.mxu0 0.0
    %1630 = vmatprep.subr.mxu0 0.0
    %1631 = vmatpush1.msra.mxu0 0.0
    %1632 = vmatprep.subr.mxu0 0.0
    %1633 = vmatpush1.msra.mxu0 0.0
    %1634 = vmatprep.subr.mxu0 0.0
    %1635 = vmatpush1.msra.mxu0 0.0
    %1636 = vmatprep.subr.mxu0 0.0
    %1637 = vmatpush1.msra.mxu0 0.0
    %1638 = vmatprep.subr.mxu0 0.0
    %1639 = vmatpush1.msra.mxu0 0.0
    %1640 = vmatprep.subr.mxu0 0.0
    %1641 = vmatpush1.msra.mxu0 0.0
    %1642 = vmatprep.subr.mxu0 0.0
    %1643 = vmatpush1.msra.mxu0 0.0
    %1644 = vmatprep.subr.mxu0 0.0
    %1645 = vmatpush1.msra.mxu0 0.0
    %1646 = vmatprep.subr.mxu0 0.0
    %1647 = vmatpush1.msra.mxu0 0.0
    %1648 = vmatprep.subr.mxu0 0.0
    %1649 = vmatpush1.msra.mxu0 0.0
    %1650 = vmatprep.subr.mxu0 0.0
    %1651 = vmatpush1.msra.mxu0 0.0
    %1652 = vmatprep.subr.mxu0 0.0
    %1653 = vmatpush1.msra.mxu0 0.0
    %1654 = vmatprep.subr.mxu0 0.0
    %1655 = vmatpush1.msra.mxu0 0.0
    %1656 = vmatprep.subr.mxu0 0.0
    %1657 = vmatpush1.msra.mxu0 0.0
    %1658 = vmatprep.subr.mxu0 0.0
    %1659 = vmatpush1.msra.mxu0 0.0
    %1660 = vmatprep.subr.mxu0 0.0
    %1661 = vmatpush1.msra.mxu0 0.0
    %1662 = vmatprep.subr.mxu0 0.0
    %1663 = vmatpush1.msra.mxu0 0.0
    %1664 = vmatprep.subr.mxu0 0.0
    %1665 = vmatpush1.msra.mxu0 0.0
    %1666 = vmatprep.subr.mxu0 0.0
    %1667 = vmatpush1.msra.mxu0 0.0
    %1668 = vmatprep.subr.mxu0 0.0
    %1669 = vmatpush1.msra.mxu0 0.0
    %1670 = vmatprep.mubr.f32.mxu0 0.0
    %1671 = vmatmul.mubr.f32.gmra.mrb[0].mxu0 %v1604
    %v1672 = vpop.f32.mrb[0].mxu0
    %v1673 = vadd.f32 0.0, %v1672
    %v1674 = vpop.f32.mrb[0].mxu0
    %1675 = vdwg.mxu0
    %v1677 = vrot.slane %v1673, 6
    %v1679 = vadd.f32 %v1079, %v1677
    %v1680 = vxor.u32 %v1679, 2147483648
    %v1681 = vmul.f32 %v1680, 1.442695
    %v1682 = vpow.pop %v1681
    %v1683 = vadd.f32 %v1682, 1.0
    %v1684 = vrcp.pop %v1683
    %v1685 = vmul.f32 1.0, %v1684
    %v1686 = vtanh.pop %v1679
    %v1688 = vrot.slane %v1594, 6
    %v1690 = vmul.f32 %v1685, %v1688
    %1692 = vrot.lane.b32.xlu0 %v1686, 32
    %v1693 = vpop.permute.xlu0 %1692
    %v1695 = vmul.f32 %v1685, %v1693
    %1697 = vrot.lane.b32.xlu0 %v1695, 32
    %v1698 = vpop.permute.xlu0 %1697
    %v1700 = vadd.f32 %v1690, %v1698
    %v1701 = vtanh.pop %v1700
    %1703 = vrot.lane.b32.xlu0 %v1701, 32
    %v1704 = vpop.permute.xlu0 %1703
    %v1706 = vmul.f32 %v1685, %v1704
    %v1708 = vrot.slane %v1706, 2
    %1709 = vrot.lane.b32.xlu0 %v1708, 64
    %v1710 = vpop.permute.xlu0 %1709
    %v1711 = vsel %vm134, %v1710, 0
    %1713 = vmatprep.subr.mxu0 0.0
    %1714 = vmatpush1.msra.mxu0 %v39
    %1715 = vmatprep.subr.mxu0 0.0
    %1716 = vmatpush1.msra.mxu0 %v40
    %1717 = vmatprep.subr.mxu0 0.0
    %1718 = vmatpush1.msra.mxu0 %v41
    %1719 = vmatprep.subr.mxu0 0.0
    %1720 = vmatpush1.msra.mxu0 %v42
    %1721 = vmatprep.subr.mxu0 0.0
    %1722 = vmatpush1.msra.mxu0 0.0
    %1723 = vmatprep.subr.mxu0 0.0
    %1724 = vmatpush1.msra.mxu0 0.0
    %1725 = vmatprep.subr.mxu0 0.0
    %1726 = vmatpush1.msra.mxu0 0.0
    %1727 = vmatprep.subr.mxu0 0.0
    %1728 = vmatpush1.msra.mxu0 0.0
    %1729 = vmatprep.subr.mxu0 0.0
    %1730 = vmatpush1.msra.mxu0 0.0
    %1731 = vmatprep.subr.mxu0 0.0
    %1732 = vmatpush1.msra.mxu0 0.0
    %1733 = vmatprep.subr.mxu0 0.0
    %1734 = vmatpush1.msra.mxu0 0.0
    %1735 = vmatprep.subr.mxu0 0.0
    %1736 = vmatpush1.msra.mxu0 0.0
    %1737 = vmatprep.subr.mxu0 0.0
    %1738 = vmatpush1.msra.mxu0 0.0
    %1739 = vmatprep.subr.mxu0 0.0
    %1740 = vmatpush1.msra.mxu0 0.0
    %1741 = vmatprep.subr.mxu0 0.0
    %1742 = vmatpush1.msra.mxu0 0.0
    %1743 = vmatprep.subr.mxu0 0.0
    %1744 = vmatpush1.msra.mxu0 0.0
    %1745 = vmatprep.subr.mxu0 0.0
    %1746 = vmatpush1.msra.mxu0 0.0
    %1747 = vmatprep.subr.mxu0 0.0
    %1748 = vmatpush1.msra.mxu0 0.0
    %1749 = vmatprep.subr.mxu0 0.0
    %1750 = vmatpush1.msra.mxu0 0.0
    %1751 = vmatprep.subr.mxu0 0.0
    %1752 = vmatpush1.msra.mxu0 0.0
    %1753 = vmatprep.subr.mxu0 0.0
    %1754 = vmatpush1.msra.mxu0 0.0
    %1755 = vmatprep.subr.mxu0 0.0
    %1756 = vmatpush1.msra.mxu0 0.0
    %1757 = vmatprep.subr.mxu0 0.0
    %1758 = vmatpush1.msra.mxu0 0.0
    %1759 = vmatprep.subr.mxu0 0.0
    %1760 = vmatpush1.msra.mxu0 0.0
    %1761 = vmatprep.subr.mxu0 0.0
    %1762 = vmatpush1.msra.mxu0 0.0
    %1763 = vmatprep.subr.mxu0 0.0
    %1764 = vmatpush1.msra.mxu0 0.0
    %1765 = vmatprep.subr.mxu0 0.0
    %1766 = vmatpush1.msra.mxu0 0.0
    %1767 = vmatprep.subr.mxu0 0.0
    %1768 = vmatpush1.msra.mxu0 0.0
    %1769 = vmatprep.subr.mxu0 0.0
    %1770 = vmatpush1.msra.mxu0 0.0
    %1771 = vmatprep.subr.mxu0 0.0
    %1772 = vmatpush1.msra.mxu0 0.0
    %1773 = vmatprep.subr.mxu0 0.0
    %1774 = vmatpush1.msra.mxu0 0.0
    %1775 = vmatprep.subr.mxu0 0.0
    %1776 = vmatpush1.msra.mxu0 0.0
    %1777 = vmatprep.mubr.f32.mxu0 0.0
    %1778 = vmatmul.mubr.f32.gmra.mrb[0].mxu0 %v1711
    %v1779 = vpop.f32.mrb[0].mxu0
    %v1780 = vadd.f32 0.0, %v1779
    %v1781 = vpop.f32.mrb[0].mxu0
    %1782 = vdwg.mxu0
    %v1784 = vrot.slane %v1780, 4
    %v1786 = vadd.f32 %v1079, %v1784
    %v1787 = vxor.u32 %v1786, 2147483648
    %v1788 = vmul.f32 %v1787, 1.442695
    %v1789 = vpow.pop %v1788
    %v1790 = vadd.f32 %v1789, 1.0
    %v1791 = vrcp.pop %v1790
    %v1792 = vmul.f32 1.0, %v1791
    %v1793 = vtanh.pop %v1786
    %v1795 = vrot.slane %v1700, 6
    %v1797 = vmul.f32 %v1792, %v1795
    %1799 = vrot.lane.b32.xlu0 %v1793, 32
    %v1800 = vpop.permute.xlu0 %1799
    %v1802 = vmul.f32 %v1792, %v1800
    %1804 = vrot.lane.b32.xlu0 %v1802, 32
    %v1805 = vpop.permute.xlu0 %1804
    %v1807 = vadd.f32 %v1797, %v1805
    %v1808 = vtanh.pop %v1807
    %1810 = vrot.lane.b32.xlu0 %v1808, 32
    %v1811 = vpop.permute.xlu0 %1810
    %v1813 = vmul.f32 %v1792, %v1811
    %v1815 = vrot.slane %v1813, 4
    %1816 = vrot.lane.b32.xlu0 %v1815, 64
    %v1817 = vpop.permute.xlu0 %1816
    %v1818 = vsel %vm134, %v1817, 0
    %1820 = vmatprep.subr.mxu0 0.0
    %1821 = vmatpush1.msra.mxu0 %v39
    %1822 = vmatprep.subr.mxu0 0.0
    %1823 = vmatpush1.msra.mxu0 %v40
    %1824 = vmatprep.subr.mxu0 0.0
    %1825 = vmatpush1.msra.mxu0 %v41
    %1826 = vmatprep.subr.mxu0 0.0
    %1827 = vmatpush1.msra.mxu0 %v42
    %1828 = vmatprep.subr.mxu0 0.0
    %1829 = vmatpush1.msra.mxu0 0.0
    %1830 = vmatprep.subr.mxu0 0.0
    %1831 = vmatpush1.msra.mxu0 0.0
    %1832 = vmatprep.subr.mxu0 0.0
    %1833 = vmatpush1.msra.mxu0 0.0
    %1834 = vmatprep.subr.mxu0 0.0
    %1835 = vmatpush1.msra.mxu0 0.0
    %1836 = vmatprep.subr.mxu0 0.0
    %1837 = vmatpush1.msra.mxu0 0.0
    %1838 = vmatprep.subr.mxu0 0.0
    %1839 = vmatpush1.msra.mxu0 0.0
    %1840 = vmatprep.subr.mxu0 0.0
    %1841 = vmatpush1.msra.mxu0 0.0
    %1842 = vmatprep.subr.mxu0 0.0
    %1843 = vmatpush1.msra.mxu0 0.0
    %1844 = vmatprep.subr.mxu0 0.0
    %1845 = vmatpush1.msra.mxu0 0.0
    %1846 = vmatprep.subr.mxu0 0.0
    %1847 = vmatpush1.msra.mxu0 0.0
    %1848 = vmatprep.subr.mxu0 0.0
    %1849 = vmatpush1.msra.mxu0 0.0
    %1850 = vmatprep.subr.mxu0 0.0
    %1851 = vmatpush1.msra.mxu0 0.0
    %1852 = vmatprep.subr.mxu0 0.0
    %1853 = vmatpush1.msra.mxu0 0.0
    %1854 = vmatprep.subr.mxu0 0.0
    %1855 = vmatpush1.msra.mxu0 0.0
    %1856 = vmatprep.subr.mxu0 0.0
    %1857 = vmatpush1.msra.mxu0 0.0
    %1858 = vmatprep.subr.mxu0 0.0
    %1859 = vmatpush1.msra.mxu0 0.0
    %1860 = vmatprep.subr.mxu0 0.0
    %1861 = vmatpush1.msra.mxu0 0.0
    %1862 = vmatprep.subr.mxu0 0.0
    %1863 = vmatpush1.msra.mxu0 0.0
    %1864 = vmatprep.subr.mxu0 0.0
    %1865 = vmatpush1.msra.mxu0 0.0
    %1866 = vmatprep.subr.mxu0 0.0
    %1867 = vmatpush1.msra.mxu0 0.0
    %1868 = vmatprep.subr.mxu0 0.0
    %1869 = vmatpush1.msra.mxu0 0.0
    %1870 = vmatprep.subr.mxu0 0.0
    %1871 = vmatpush1.msra.mxu0 0.0
    %1872 = vmatprep.subr.mxu0 0.0
    %1873 = vmatpush1.msra.mxu0 0.0
    %1874 = vmatprep.subr.mxu0 0.0
    %1875 = vmatpush1.msra.mxu0 0.0
    %1876 = vmatprep.subr.mxu0 0.0
    %1877 = vmatpush1.msra.mxu0 0.0
    %1878 = vmatprep.subr.mxu0 0.0
    %1879 = vmatpush1.msra.mxu0 0.0
    %1880 = vmatprep.subr.mxu0 0.0
    %1881 = vmatpush1.msra.mxu0 0.0
    %1882 = vmatprep.subr.mxu0 0.0
    %1883 = vmatpush1.msra.mxu0 0.0
    %1884 = vmatprep.mubr.f32.mxu0 0.0
    %1885 = vmatmul.mubr.f32.gmra.mrb[0].mxu0 %v1818
    %v1886 = vpop.f32.mrb[0].mxu0
    %v1887 = vadd.f32 0.0, %v1886
    %v1888 = vpop.f32.mrb[0].mxu0
    %1889 = vdwg.mxu0
    %v1891 = vrot.slane %v1887, 2
    %v1893 = vadd.f32 %v1079, %v1891
    %v1894 = vxor.u32 %v1893, 2147483648
    %v1895 = vmul.f32 %v1894, 1.442695
    %v1896 = vpow.pop %v1895
    %v1897 = vadd.f32 %v1896, 1.0
    %v1898 = vrcp.pop %v1897
    %v1899 = vmul.f32 1.0, %v1898
    %v1900 = vtanh.pop %v1893
    %v1902 = vrot.slane %v1807, 6
    %v1904 = vmul.f32 %v1899, %v1902
    %1906 = vrot.lane.b32.xlu0 %v1900, 32
    %v1907 = vpop.permute.xlu0 %1906
    %v1909 = vmul.f32 %v1899, %v1907
    %1911 = vrot.lane.b32.xlu0 %v1909, 32
    %v1912 = vpop.permute.xlu0 %1911
    %v1914 = vadd.f32 %v1904, %v1912
    %v1915 = vtanh.pop %v1914
    %1917 = vrot.lane.b32.xlu0 %v1915, 32
    %v1918 = vpop.permute.xlu0 %1917
    %v1920 = vmul.f32 %v1899, %v1918
    %v1921 = vrot.slane %v1282, 1
    %v1923 = vrot.slane %v1389, 2
    %v1925 = vrot.slane %v1496, 3
    %v1927 = vrot.slane %v1600, 4
    %v1929 = vrot.slane %v1706, 5
    %v1931 = vrot.slane %v1813, 6
    %v1934 = vrot.slane %v1920, 7
    %v1936 = vrot.slane %v1176, 1
    %v1939 = vrot.slane %v1389, 3
    %v1941 = vrot.slane %v1496, 4
    %v1943 = vrot.slane %v1600, 5
    %v1945 = vrot.slane %v1706, 6
    %v1947 = vrot.slane %v1813, 7
    %vm1949 = vcmask 1040384
    %v1950 = vsel %vm1949, %v1176, %v1921
    %v1951 = vsel %vm977, %v1950, %v1923
    %vm1952 = vcmask 1042432
    %v1953 = vsel %vm1952, %v1951, %v1925
    %v1954 = vsel %vm979, %v1953, %v1927
    %vm1955 = vcmask 1044480
    %v1956 = vsel %vm1955, %v1954, %v1929
    %v1957 = vsel %vm981, %v1956, %v1931
    %vm1958 = vcmask 1046528
    %v1959 = vsel %vm1958, %v1957, %v1934
    %v1960 = vsel %vm1949, %v1936, %v1284
    %v1961 = vsel %vm977, %v1960, %v1939
    %v1962 = vsel %vm1952, %v1961, %v1941
    %v1963 = vsel %vm979, %v1962, %v1943
    %v1964 = vsel %vm1955, %v1963, %v1945
    %v1965 = vsel %vm981, %v1964, %v1947
    %v1966 = vsel %vm1958, %v1965, %v1920
    %v1967 = vld [vmem:[%s7] sm:$0xff]
    %v1968 = vld [vmem:[%s7 + $0x8] sm:$0xff]
    %v1969 = vld [vmem:[%s7 + $0x10] sm:$0xff]
    %v1970 = vld [vmem:[%s7 + $0x18] sm:$0xff]
    %v1971 = vld [vmem:[%s8] sm:$0x1]
    %v1973 = vlaneseq
    %v1974 = vshrl.u32 %v1973, 7
    %v1975 = vsub.s32 0, %v1974
    %v1976 = vrot.slane %v1971, %v1975
    %1980 = vrot.lane.b32.xlu0 %v1959, 64
    %v1981 = vpop.permute.xlu0 %1980
    %1982 = vrot.lane.b32.xlu0 %v1966, 64
    %v1983 = vpop.permute.xlu0 %1982
    %v1984 = vsel %vm134, %v1981, 0
    %v1986 = vsel %vm134, %v1983, 0
    %1988 = vmatprep.subr.mxu0 0.0
    %1989 = vmatpush1.msra.mxu0 %v1967
    %1990 = vmatprep.subr.mxu0 0.0
    %1991 = vmatpush1.msra.mxu0 %v1968
    %1992 = vmatprep.subr.mxu0 0.0
    %1993 = vmatpush1.msra.mxu0 %v1969
    %1994 = vmatprep.subr.mxu0 0.0
    %1995 = vmatpush1.msra.mxu0 %v1970
    %1996 = vmatprep.subr.mxu0 0.0
    %1997 = vmatpush1.msra.mxu0 0.0
    %1998 = vmatprep.subr.mxu0 0.0
    %1999 = vmatpush1.msra.mxu0 0.0
    %2000 = vmatprep.subr.mxu0 0.0
    %2001 = vmatpush1.msra.mxu0 0.0
    %2002 = vmatprep.subr.mxu0 0.0
    %2003 = vmatpush1.msra.mxu0 0.0
    %2004 = vmatprep.subr.mxu0 0.0
    %2005 = vmatpush1.msra.mxu0 0.0
    %2006 = vmatprep.subr.mxu0 0.0
    %2007 = vmatpush1.msra.mxu0 0.0
    %2008 = vmatprep.subr.mxu0 0.0
    %2009 = vmatpush1.msra.mxu0 0.0
    %2010 = vmatprep.subr.mxu0 0.0
    %2011 = vmatpush1.msra.mxu0 0.0
    %2012 = vmatprep.subr.mxu0 0.0
    %2013 = vmatpush1.msra.mxu0 0.0
    %2014 = vmatprep.subr.mxu0 0.0
    %2015 = vmatpush1.msra.mxu0 0.0
    %2016 = vmatprep.subr.mxu0 0.0
    %2017 = vmatpush1.msra.mxu0 0.0
    %2018 = vmatprep.subr.mxu0 0.0
    %2019 = vmatpush1.msra.mxu0 0.0
    %2020 = vmatprep.subr.mxu0 0.0
    %2021 = vmatpush1.msra.mxu0 0.0
    %2022 = vmatprep.subr.mxu0 0.0
    %2023 = vmatpush1.msra.mxu0 0.0
    %2024 = vmatprep.subr.mxu0 0.0
    %2025 = vmatpush1.msra.mxu0 0.0
    %2026 = vmatprep.subr.mxu0 0.0
    %2027 = vmatpush1.msra.mxu0 0.0
    %2028 = vmatprep.subr.mxu0 0.0
    %2029 = vmatpush1.msra.mxu0 0.0
    %2030 = vmatprep.subr.mxu0 0.0
    %2031 = vmatpush1.msra.mxu0 0.0
    %2032 = vmatprep.subr.mxu0 0.0
    %2033 = vmatpush1.msra.mxu0 0.0
    %2034 = vmatprep.subr.mxu0 0.0
    %2035 = vmatpush1.msra.mxu0 0.0
    %2036 = vmatprep.subr.mxu0 0.0
    %2037 = vmatpush1.msra.mxu0 0.0
    %2038 = vmatprep.subr.mxu0 0.0
    %2039 = vmatpush1.msra.mxu0 0.0
    %2040 = vmatprep.subr.mxu0 0.0
    %2041 = vmatpush1.msra.mxu0 0.0
    %2042 = vmatprep.subr.mxu0 0.0
    %2043 = vmatpush1.msra.mxu0 0.0
    %2044 = vmatprep.subr.mxu0 0.0
    %2045 = vmatpush1.msra.mxu0 0.0
    %2046 = vmatprep.subr.mxu0 0.0
    %2047 = vmatpush1.msra.mxu0 0.0
    %2048 = vmatprep.subr.mxu0 0.0
    %2049 = vmatpush1.msra.mxu0 0.0
    %2050 = vmatprep.subr.mxu0 0.0
    %2051 = vmatpush1.msra.mxu0 0.0
    %2052 = vmatprep.mubr.f32.mxu0 0.0
    %2053 = vmatmul.mubr.f32.gmra.mrb[0].mxu0 %v1984
    %v2054 = vpop.f32.mrb[0].mxu0
    %v2055 = vadd.f32 %v1976, %v2054
    %v2056 = vpop.f32.mrb[0].mxu0
    %2057 = vmatprep.mubr.f32.mxu0 0.0
    %2058 = vmatmul.mubr.f32.gmra.mrb[0].mxu0 %v1986
    %v2059 = vpop.f32.mrb[0].mxu0
    %v2060 = vadd.f32 %v1976, %v2059
    %v2061 = vpop.f32.mrb[0].mxu0
    %2062 = vdwg.mxu0
    %vm2063 = vcmask 408576
    %2064 = vst.msk [vmem:[#allocation2] sm:$0xff] %vm2063, %v2055
    %2065 = vst.msk [vmem:[#allocation2 + $0x8] sm:$0xff] %vm2063, %v2060
    // Predicated region
    $region38: #{lstm_generator_forward.1} parent=1 // pred_check
      _
    $region39: #{lstm_generator_forward.1} parent=1 // pred_check_branch
      %2067 = sbr.rel (0) target = $region41
    $region40: #{lstm_generator_forward.1} parent=1 // pred_region
      %s2069 = ssub.s32 256, 256
      %2070 = vsyncadd [#allocation3], %s2069
      %s2071 = sshll.u32 [#allocation2], 4
      %s2072 = int_to_ptr.vmem [resolvable:$true] %s2071
      %2077 = dma.vmem_to_hbm [thread:$0]  %s2072, 256, %s9, [#allocation3], 128, 128, 8
    $region41: #{lstm_generator_forward.1} parent=1 // pred_fallthru
      _
    // Predicated region
    $region42: #{lstm_generator_forward.1} parent=1 // pred_check
      _
    $region43: #{lstm_generator_forward.1} parent=1 // pred_check_branch
      %2079 = sbr.rel (0) target = $region45
    $region44: #{lstm_generator_forward.1} parent=1 // pred_region
      %2080 = dma.done [#allocation3], 256
    $region45: #{lstm_generator_forward.1} parent=1 // pred_fallthru
      _
    %2081 = vsyncpa [#allocation3], 1

</llo_original>
